<compile_context>
chip_gen: v5e
topology: v5e:2x2
jax: 0.10.0
libtpu: 0.0.40
codegen_flags: <defaults>
</compile_context>

<pallas_src>
import functools
import math

import jax
import jax.numpy as jnp
from jax.experimental import pallas as pl
from jax.experimental.pallas import tpu as pltpu


CFG = dict(vocab=100, max_pos=16, type_vocab=2,
           hidden=32, heads=4, intermediate=64, layers=2, num_labels=4)

_VMEM = pl.BlockSpec(memory_space=pltpu.MemorySpace.VMEM)


# ------------------------------ fused kernel -------------------------------

def _bert_fused_kernel(
    emb_ref, bias_ref,
    eg_ref, eb_ref,
    wqkv_ref, bqkv_ref, wao_ref, bao_ref, g1_ref, b1_ref,
    wi_ref, bi_ref, wo_ref, bo_ref, g2_ref, b2_ref,
    pw_ref, pb_ref, fw_ref, fb_ref,
    logits_ref,
    *, B, S, H, nh, L, eps):
    D = H // nh
    scale = 1.0 / math.sqrt(D)

    def layer_norm(x, g, b):
        mean = jnp.mean(x, axis=-1, keepdims=True)
        c = x - mean
        var = jnp.mean(c * c, axis=-1, keepdims=True)
        return c * jax.lax.rsqrt(var + eps) * g + b

    def gelu(x):
        # TODO(synk): HF BERT default is exact erf-GELU; tanh approximation used
        # here since erf lowering inside Mosaic is not guaranteed.
        c = math.sqrt(2.0 / math.pi)
        return 0.5 * x * (1.0 + jnp.tanh(c * (x + 0.044715 * x * x * x)))

    # Embedding LayerNorm (no residual path -> no zero tensor materialized).
    h = layer_norm(emb_ref[...].astype(jnp.float32), eg_ref[...], eb_ref[...])

    bias = bias_ref[...]                              # (B*S, B*S) block-diag bias

    for l in range(L):                                # unrolled; weights stay in VMEM
        # Fused QKV projection: one (B*S, H) @ (H, 3H) matmul.
        qkv = jnp.dot(h, wqkv_ref[l], preferred_element_type=jnp.float32) + bqkv_ref[l]
        wao = wao_ref[l]                              # (H, H)

        attn = None
        for hd in range(nh):                          # static head loop, 2-D ops only
            # 1/sqrt(D) folded into the (B*S, D) q slice (not the (B*S,B*S) scores).
            q = qkv[:, hd * D:(hd + 1) * D] * scale               # (B*S, D)
            k = qkv[:, H + hd * D:H + (hd + 1) * D]               # (B*S, D)
            v = qkv[:, 2 * H + hd * D:2 * H + (hd + 1) * D]       # (B*S, D)

            s = jnp.dot(q, k.T, preferred_element_type=jnp.float32) + bias
            s = s - jnp.max(s, axis=-1, keepdims=True)
            p = jnp.exp(s)
            inv_l = pl.reciprocal(jnp.sum(p, axis=-1, keepdims=True), approx=True)
            # Normalize the (B*S, D) context instead of the (B*S, B*S) probs.
            ctx = jnp.dot(p, v, preferred_element_type=jnp.float32) * inv_l

            # Fold the head-concat into the output projection:
            # concat_h(ctx_h) @ W_ao == sum_h ctx_h @ W_ao[h*D:(h+1)*D, :]
            part = jnp.dot(ctx, wao[hd * D:(hd + 1) * D, :],
                           preferred_element_type=jnp.float32)           # (B*S, H)
            attn = part if attn is None else attn + part

        attn = attn + bao_ref[l]
        h = layer_norm(attn + h, g1_ref[l], b1_ref[l])        # post-LN: LN(x + attn)

        inter = gelu(jnp.dot(h, wi_ref[l], preferred_element_type=jnp.float32)
                     + bi_ref[l])
        ffn = jnp.dot(inter, wo_ref[l], preferred_element_type=jnp.float32) + bo_ref[l]
        h = layer_norm(ffn + h, g2_ref[l], b2_ref[l])         # post-LN: LN(x + ffn)

    # Pooler input: [CLS] rows (0, S, 2S, ...) selected with a tiny matmul.
    col = jax.lax.broadcasted_iota(jnp.int32, (B, B * S), 1)
    row = jax.lax.broadcasted_iota(jnp.int32, (B, B * S), 0)
    sel = (col == row * S).astype(jnp.float32)                 # (B, B*S)
    cls = jnp.dot(sel, h, preferred_element_type=jnp.float32)  # (B, H)

    pooled = jnp.tanh(jnp.dot(cls, pw_ref[...],
                              preferred_element_type=jnp.float32) + pb_ref[...])
    logits = jnp.dot(pooled, fw_ref[...],
                     preferred_element_type=jnp.float32) + fb_ref[...]
    logits_ref[...] = logits.astype(logits_ref.dtype)


# ------------------------------- model glue --------------------------------

def init_params(key, cfg):
    H, I, L = cfg["hidden"], cfg["intermediate"], cfg["layers"]
    keys = iter(jax.random.split(key, 16))

    def w(shape):
        return jax.random.normal(next(keys), shape, jnp.float32) * 0.02

    return dict(
        word_emb=w((cfg["vocab"], H)),
        pos_emb=w((cfg["max_pos"], H)),
        type_emb=w((cfg["type_vocab"], H)),
        emb_ln_g=jnp.ones((1, H), jnp.float32),
        emb_ln_b=jnp.zeros((1, H), jnp.float32),
        # Per-layer weights stacked along a leading L axis.
        w_qkv=w((L, H, 3 * H)),
        b_qkv=jnp.zeros((L, 1, 3 * H), jnp.float32),
        w_ao=w((L, H, H)),
        b_ao=jnp.zeros((L, 1, H), jnp.float32),
        ln1_g=jnp.ones((L, 1, H), jnp.float32),
        ln1_b=jnp.zeros((L, 1, H), jnp.float32),
        w_i=w((L, H, I)),
        b_i=jnp.zeros((L, 1, I), jnp.float32),
        w_o=w((L, I, H)),
        b_o=jnp.zeros((L, 1, H), jnp.float32),
        ln2_g=jnp.ones((L, 1, H), jnp.float32),
        ln2_b=jnp.zeros((L, 1, H), jnp.float32),
        pool_w=w((H, H)),
        pool_b=jnp.zeros((1, H), jnp.float32),
        fc_w=w((H, cfg["num_labels"])),
        fc_b=jnp.zeros((1, cfg["num_labels"]), jnp.float32),
    )


@functools.partial(jax.jit, static_argnames=("cfg_key",))
def _forward_jit(params, input_ids, attention_mask, cfg_key):
    cfg = dict(cfg_key)
    B, S = input_ids.shape
    H = cfg["hidden"]

    # Embedding gathers (word + position + token-type 0) are XLA glue.
    emb = (params["word_emb"][input_ids]
           + params["pos_emb"][jnp.arange(S)][None, :, :]
           + params["type_emb"][0][None, None, :]).reshape(B * S, H)

    # HF additive mask bias (1 - mask) * -10000 per key, expanded to a
    # block-diagonal (B*S, B*S) bias so attention for all batches runs in one
    # matmul; cross-batch entries get -1e9 so their softmax weight is exactly 0.
    key_bias = ((1.0 - attention_mask.astype(jnp.float32)) * -10000.0).reshape(1, B * S)
    block = jnp.kron(jnp.eye(B, dtype=jnp.float32), jnp.ones((S, S), jnp.float32))
    bias_full = jnp.where(block > 0.0, key_bias, -1e9)

    kernel = functools.partial(
        _bert_fused_kernel, B=B, S=S, H=H, nh=cfg["heads"],
        L=cfg["layers"], eps=1e-12)

    return pl.pallas_call(
        kernel,
        out_shape=jax.ShapeDtypeStruct((B, cfg["num_labels"]), jnp.float32),
        in_specs=[_VMEM] * 20,
        out_specs=_VMEM,
    )(emb, bias_full,
      params["emb_ln_g"], params["emb_ln_b"],
      params["w_qkv"], params["b_qkv"], params["w_ao"], params["b_ao"],
      params["ln1_g"], params["ln1_b"],
      params["w_i"], params["b_i"], params["w_o"], params["b_o"],
      params["ln2_g"], params["ln2_b"],
      params["pool_w"], params["pool_b"], params["fc_w"], params["fc_b"])


def model_forward(params, input_ids, attention_mask, cfg):
    return _forward_jit(params, input_ids, attention_mask,
                        tuple(sorted(cfg.items())))


if __name__ == "__main__":
    key = jax.random.PRNGKey(0)
    k_param, k_ids = jax.random.split(key)

    B, S = 2, 8
    params = init_params(k_param, CFG)
    input_ids = jax.random.randint(k_ids, (B, S), 0, CFG["vocab"], dtype=jnp.int32)
    attention_mask = jnp.array([[1, 1, 1, 1, 1, 1, 1, 1],
                                [1, 1, 1, 1, 1, 1, 0, 0]], dtype=jnp.int32)

    logits = model_forward(params, input_ids, attention_mask, CFG)
    logits = jax.block_until_ready(logits)
    assert logits.shape == (B, CFG["num_labels"])
    print("KERNEL_OK")
</pallas_src>

<mosaic_0001>
module attributes {stable_mosaic.version = 11 : i64} {
  func.func @_bert_fused_kernel(%arg0: memref<16x32xf32, #tpu.memory_space<vmem>>, %arg1: memref<16x16xf32, #tpu.memory_space<vmem>>, %arg2: memref<1x32xf32, #tpu.memory_space<vmem>>, %arg3: memref<1x32xf32, #tpu.memory_space<vmem>>, %arg4: memref<2x32x96xf32, #tpu.memory_space<vmem>>, %arg5: memref<2x1x96xf32, #tpu.memory_space<vmem>>, %arg6: memref<2x32x32xf32, #tpu.memory_space<vmem>>, %arg7: memref<2x1x32xf32, #tpu.memory_space<vmem>>, %arg8: memref<2x1x32xf32, #tpu.memory_space<vmem>>, %arg9: memref<2x1x32xf32, #tpu.memory_space<vmem>>, %arg10: memref<2x32x64xf32, #tpu.memory_space<vmem>>, %arg11: memref<2x1x64xf32, #tpu.memory_space<vmem>>, %arg12: memref<2x64x32xf32, #tpu.memory_space<vmem>>, %arg13: memref<2x1x32xf32, #tpu.memory_space<vmem>>, %arg14: memref<2x1x32xf32, #tpu.memory_space<vmem>>, %arg15: memref<2x1x32xf32, #tpu.memory_space<vmem>>, %arg16: memref<32x32xf32, #tpu.memory_space<vmem>>, %arg17: memref<1x32xf32, #tpu.memory_space<vmem>>, %arg18: memref<32x4xf32, #tpu.memory_space<vmem>>, %arg19: memref<1x4xf32, #tpu.memory_space<vmem>>, %arg20: memref<2x4xf32, #tpu.memory_space<vmem>>) attributes {dimension_semantics = [], scalar_prefetch = 0 : i64, scratch_operands = 0 : i64, tpu.core_type = #tpu.core_type<tc>} {
    %c0 = arith.constant 0 : index
    %c0_0 = arith.constant 0 : index
    %0 = vector.load %arg0[%c0, %c0_0] : memref<16x32xf32, #tpu.memory_space<vmem>>, vector<16x32xf32>
    %c0_1 = arith.constant 0 : index
    %c0_2 = arith.constant 0 : index
    %1 = vector.load %arg2[%c0_1, %c0_2] : memref<1x32xf32, #tpu.memory_space<vmem>>, vector<1x32xf32>
    %c0_3 = arith.constant 0 : index
    %c0_4 = arith.constant 0 : index
    %2 = vector.load %arg3[%c0_3, %c0_4] : memref<1x32xf32, #tpu.memory_space<vmem>>, vector<1x32xf32>
    %cst = arith.constant dense<0.000000e+00> : vector<16xf32>
    %3 = vector.multi_reduction <add>, %0, %cst [1] : vector<16x32xf32> to vector<16xf32>
    %4 = vector.shape_cast %3 : vector<16xf32> to vector<16x1xf32>
    %cst_5 = arith.constant 3.200000e+01 : f32
    %5 = vector.broadcast %cst_5 : f32 to vector<16x1xf32>
    %6 = arith.divf %4, %5 : vector<16x1xf32>
    %7 = vector.broadcast %6 : vector<16x1xf32> to vector<16x32xf32>
    %8 = arith.subf %0, %7 : vector<16x32xf32>
    %9 = arith.mulf %8, %8 : vector<16x32xf32>
    %cst_6 = arith.constant dense<0.000000e+00> : vector<16xf32>
    %10 = vector.multi_reduction <add>, %9, %cst_6 [1] : vector<16x32xf32> to vector<16xf32>
    %11 = vector.shape_cast %10 : vector<16xf32> to vector<16x1xf32>
    %cst_7 = arith.constant 3.200000e+01 : f32
    %12 = vector.broadcast %cst_7 : f32 to vector<16x1xf32>
    %13 = arith.divf %11, %12 : vector<16x1xf32>
    %cst_8 = arith.constant 9.99999996E-13 : f32
    %14 = vector.broadcast %cst_8 : f32 to vector<16x1xf32>
    %15 = arith.addf %13, %14 : vector<16x1xf32>
    %16 = math.rsqrt %15 : vector<16x1xf32>
    %17 = vector.broadcast %16 : vector<16x1xf32> to vector<16x32xf32>
    %18 = arith.mulf %8, %17 : vector<16x32xf32>
    %19 = vector.broadcast %1 : vector<1x32xf32> to vector<16x32xf32>
    %20 = arith.mulf %18, %19 : vector<16x32xf32>
    %21 = vector.broadcast %2 : vector<1x32xf32> to vector<16x32xf32>
    %22 = arith.addf %20, %21 : vector<16x32xf32>
    %c0_9 = arith.constant 0 : index
    %c0_10 = arith.constant 0 : index
    %23 = vector.load %arg1[%c0_9, %c0_10] : memref<16x16xf32, #tpu.memory_space<vmem>>, vector<16x16xf32>
    %c0_11 = arith.constant 0 : index
    %c0_12 = arith.constant 0 : index
    %c0_13 = arith.constant 0 : index
    %24 = vector.load %arg4[%c0_11, %c0_12, %c0_13] : memref<2x32x96xf32, #tpu.memory_space<vmem>>, vector<1x32x96xf32>
    %25 = vector.shape_cast %24 : vector<1x32x96xf32> to vector<32x96xf32>
    %cst_14 = arith.constant dense<0.000000e+00> : vector<16x96xf32>
    %26 = tpu.matmul %22, %25, %cst_14 {dimension_numbers = #tpu.dot_dimension_numbers<[1], [0], [0], [1], [0, 0, 1, 1], [], []>} : vector<16x32xf32>, vector<32x96xf32>, vector<16x96xf32> -> vector<16x96xf32>
    %c0_15 = arith.constant 0 : index
    %c0_16 = arith.constant 0 : index
    %c0_17 = arith.constant 0 : index
    %27 = vector.load %arg5[%c0_15, %c0_16, %c0_17] : memref<2x1x96xf32, #tpu.memory_space<vmem>>, vector<1x1x96xf32>
    %28 = vector.shape_cast %27 : vector<1x1x96xf32> to vector<1x96xf32>
    %29 = vector.broadcast %28 : vector<1x96xf32> to vector<16x96xf32>
    %30 = arith.addf %26, %29 : vector<16x96xf32>
    %c0_18 = arith.constant 0 : index
    %c0_19 = arith.constant 0 : index
    %c0_20 = arith.constant 0 : index
    %31 = vector.load %arg6[%c0_18, %c0_19, %c0_20] : memref<2x32x32xf32, #tpu.memory_space<vmem>>, vector<1x32x32xf32>
    %32 = vector.shape_cast %31 : vector<1x32x32xf32> to vector<32x32xf32>
    %33 = vector.extract_strided_slice %30 {offsets = [0, 0], sizes = [16, 8], strides = [1, 1]} : vector<16x96xf32> to vector<16x8xf32>
    %cst_21 = arith.constant 0.353553385 : f32
    %34 = vector.broadcast %cst_21 : f32 to vector<16x8xf32>
    %35 = arith.mulf %33, %34 : vector<16x8xf32>
    %36 = vector.extract_strided_slice %30 {offsets = [0, 32], sizes = [16, 8], strides = [1, 1]} : vector<16x96xf32> to vector<16x8xf32>
    %37 = vector.extract_strided_slice %30 {offsets = [0, 64], sizes = [16, 8], strides = [1, 1]} : vector<16x96xf32> to vector<16x8xf32>
    %38 = tpu.transpose %36, [1, 0] : vector<16x8xf32> -> vector<8x16xf32>
    %cst_22 = arith.constant dense<0.000000e+00> : vector<16x16xf32>
    %39 = tpu.matmul %35, %38, %cst_22 {dimension_numbers = #tpu.dot_dimension_numbers<[1], [0], [0], [1], [0, 0, 1, 1], [], []>} : vector<16x8xf32>, vector<8x16xf32>, vector<16x16xf32> -> vector<16x16xf32>
    %40 = arith.addf %39, %23 : vector<16x16xf32>
    %cst_23 = arith.constant dense<0xFF800000> : vector<16xf32>
    %41 = vector.multi_reduction <maximumf>, %40, %cst_23 [1] : vector<16x16xf32> to vector<16xf32>
    %42 = vector.shape_cast %41 : vector<16xf32> to vector<16x1xf32>
    %43 = vector.broadcast %42 : vector<16x1xf32> to vector<16x16xf32>
    %44 = arith.subf %40, %43 : vector<16x16xf32>
    %45 = math.exp %44 : vector<16x16xf32>
    %cst_24 = arith.constant dense<0.000000e+00> : vector<16xf32>
    %46 = vector.multi_reduction <add>, %45, %cst_24 [1] : vector<16x16xf32> to vector<16xf32>
    %47 = vector.shape_cast %46 : vector<16xf32> to vector<16x1xf32>
    %48 = tpu.reciprocal %47 {approx = true} : vector<16x1xf32> -> vector<16x1xf32>
    %cst_25 = arith.constant dense<0.000000e+00> : vector<16x8xf32>
    %49 = tpu.matmul %45, %37, %cst_25 {dimension_numbers = #tpu.dot_dimension_numbers<[1], [0], [0], [1], [0, 0, 1, 1], [], []>} : vector<16x16xf32>, vector<16x8xf32>, vector<16x8xf32> -> vector<16x8xf32>
    %50 = vector.broadcast %48 : vector<16x1xf32> to vector<16x8xf32>
    %51 = arith.mulf %49, %50 : vector<16x8xf32>
    %52 = vector.extract_strided_slice %32 {offsets = [0, 0], sizes = [8, 32], strides = [1, 1]} : vector<32x32xf32> to vector<8x32xf32>
    %cst_26 = arith.constant dense<0.000000e+00> : vector<16x32xf32>
    %53 = tpu.matmul %51, %52, %cst_26 {dimension_numbers = #tpu.dot_dimension_numbers<[1], [0], [0], [1], [0, 0, 1, 1], [], []>} : vector<16x8xf32>, vector<8x32xf32>, vector<16x32xf32> -> vector<16x32xf32>
    %54 = vector.extract_strided_slice %30 {offsets = [0, 8], sizes = [16, 8], strides = [1, 1]} : vector<16x96xf32> to vector<16x8xf32>
    %cst_27 = arith.constant 0.353553385 : f32
    %55 = vector.broadcast %cst_27 : f32 to vector<16x8xf32>
    %56 = arith.mulf %54, %55 : vector<16x8xf32>
    %57 = vector.extract_strided_slice %30 {offsets = [0, 40], sizes = [16, 8], strides = [1, 1]} : vector<16x96xf32> to vector<16x8xf32>
    %58 = vector.extract_strided_slice %30 {offsets = [0, 72], sizes = [16, 8], strides = [1, 1]} : vector<16x96xf32> to vector<16x8xf32>
    %59 = tpu.transpose %57, [1, 0] : vector<16x8xf32> -> vector<8x16xf32>
    %cst_28 = arith.constant dense<0.000000e+00> : vector<16x16xf32>
    %60 = tpu.matmul %56, %59, %cst_28 {dimension_numbers = #tpu.dot_dimension_numbers<[1], [0], [0], [1], [0, 0, 1, 1], [], []>} : vector<16x8xf32>, vector<8x16xf32>, vector<16x16xf32> -> vector<16x16xf32>
    %61 = arith.addf %60, %23 : vector<16x16xf32>
    %cst_29 = arith.constant dense<0xFF800000> : vector<16xf32>
    %62 = vector.multi_reduction <maximumf>, %61, %cst_29 [1] : vector<16x16xf32> to vector<16xf32>
    %63 = vector.shape_cast %62 : vector<16xf32> to vector<16x1xf32>
    %64 = vector.broadcast %63 : vector<16x1xf32> to vector<16x16xf32>
    %65 = arith.subf %61, %64 : vector<16x16xf32>
    %66 = math.exp %65 : vector<16x16xf32>
    %cst_30 = arith.constant dense<0.000000e+00> : vector<16xf32>
    %67 = vector.multi_reduction <add>, %66, %cst_30 [1] : vector<16x16xf32> to vector<16xf32>
    %68 = vector.shape_cast %67 : vector<16xf32> to vector<16x1xf32>
    %69 = tpu.reciprocal %68 {approx = true} : vector<16x1xf32> -> vector<16x1xf32>
    %cst_31 = arith.constant dense<0.000000e+00> : vector<16x8xf32>
    %70 = tpu.matmul %66, %58, %cst_31 {dimension_numbers = #tpu.dot_dimension_numbers<[1], [0], [0], [1], [0, 0, 1, 1], [], []>} : vector<16x16xf32>, vector<16x8xf32>, vector<16x8xf32> -> vector<16x8xf32>
    %71 = vector.broadcast %69 : vector<16x1xf32> to vector<16x8xf32>
    %72 = arith.mulf %70, %71 : vector<16x8xf32>
    %73 = vector.extract_strided_slice %32 {offsets = [8, 0], sizes = [8, 32], strides = [1, 1]} : vector<32x32xf32> to vector<8x32xf32>
    %cst_32 = arith.constant dense<0.000000e+00> : vector<16x32xf32>
    %74 = tpu.matmul %72, %73, %cst_32 {dimension_numbers = #tpu.dot_dimension_numbers<[1], [0], [0], [1], [0, 0, 1, 1], [], []>} : vector<16x8xf32>, vector<8x32xf32>, vector<16x32xf32> -> vector<16x32xf32>
    %75 = arith.addf %53, %74 : vector<16x32xf32>
    %76 = vector.extract_strided_slice %30 {offsets = [0, 16], sizes = [16, 8], strides = [1, 1]} : vector<16x96xf32> to vector<16x8xf32>
    %cst_33 = arith.constant 0.353553385 : f32
    %77 = vector.broadcast %cst_33 : f32 to vector<16x8xf32>
    %78 = arith.mulf %76, %77 : vector<16x8xf32>
    %79 = vector.extract_strided_slice %30 {offsets = [0, 48], sizes = [16, 8], strides = [1, 1]} : vector<16x96xf32> to vector<16x8xf32>
    %80 = vector.extract_strided_slice %30 {offsets = [0, 80], sizes = [16, 8], strides = [1, 1]} : vector<16x96xf32> to vector<16x8xf32>
    %81 = tpu.transpose %79, [1, 0] : vector<16x8xf32> -> vector<8x16xf32>
    %cst_34 = arith.constant dense<0.000000e+00> : vector<16x16xf32>
    %82 = tpu.matmul %78, %81, %cst_34 {dimension_numbers = #tpu.dot_dimension_numbers<[1], [0], [0], [1], [0, 0, 1, 1], [], []>} : vector<16x8xf32>, vector<8x16xf32>, vector<16x16xf32> -> vector<16x16xf32>
    %83 = arith.addf %82, %23 : vector<16x16xf32>
    %cst_35 = arith.constant dense<0xFF800000> : vector<16xf32>
    %84 = vector.multi_reduction <maximumf>, %83, %cst_35 [1] : vector<16x16xf32> to vector<16xf32>
    %85 = vector.shape_cast %84 : vector<16xf32> to vector<16x1xf32>
    %86 = vector.broadcast %85 : vector<16x1xf32> to vector<16x16xf32>
    %87 = arith.subf %83, %86 : vector<16x16xf32>
    %88 = math.exp %87 : vector<16x16xf32>
    %cst_36 = arith.constant dense<0.000000e+00> : vector<16xf32>
    %89 = vector.multi_reduction <add>, %88, %cst_36 [1] : vector<16x16xf32> to vector<16xf32>
    %90 = vector.shape_cast %89 : vector<16xf32> to vector<16x1xf32>
    %91 = tpu.reciprocal %90 {approx = true} : vector<16x1xf32> -> vector<16x1xf32>
    %cst_37 = arith.constant dense<0.000000e+00> : vector<16x8xf32>
    %92 = tpu.matmul %88, %80, %cst_37 {dimension_numbers = #tpu.dot_dimension_numbers<[1], [0], [0], [1], [0, 0, 1, 1], [], []>} : vector<16x16xf32>, vector<16x8xf32>, vector<16x8xf32> -> vector<16x8xf32>
    %93 = vector.broadcast %91 : vector<16x1xf32> to vector<16x8xf32>
    %94 = arith.mulf %92, %93 : vector<16x8xf32>
    %95 = vector.extract_strided_slice %32 {offsets = [16, 0], sizes = [8, 32], strides = [1, 1]} : vector<32x32xf32> to vector<8x32xf32>
    %cst_38 = arith.constant dense<0.000000e+00> : vector<16x32xf32>
    %96 = tpu.matmul %94, %95, %cst_38 {dimension_numbers = #tpu.dot_dimension_numbers<[1], [0], [0], [1], [0, 0, 1, 1], [], []>} : vector<16x8xf32>, vector<8x32xf32>, vector<16x32xf32> -> vector<16x32xf32>
    %97 = arith.addf %75, %96 : vector<16x32xf32>
    %98 = vector.extract_strided_slice %30 {offsets = [0, 24], sizes = [16, 8], strides = [1, 1]} : vector<16x96xf32> to vector<16x8xf32>
    %cst_39 = arith.constant 0.353553385 : f32
    %99 = vector.broadcast %cst_39 : f32 to vector<16x8xf32>
    %100 = arith.mulf %98, %99 : vector<16x8xf32>
    %101 = vector.extract_strided_slice %30 {offsets = [0, 56], sizes = [16, 8], strides = [1, 1]} : vector<16x96xf32> to vector<16x8xf32>
    %102 = vector.extract_strided_slice %30 {offsets = [0, 88], sizes = [16, 8], strides = [1, 1]} : vector<16x96xf32> to vector<16x8xf32>
    %103 = tpu.transpose %101, [1, 0] : vector<16x8xf32> -> vector<8x16xf32>
    %cst_40 = arith.constant dense<0.000000e+00> : vector<16x16xf32>
    %104 = tpu.matmul %100, %103, %cst_40 {dimension_numbers = #tpu.dot_dimension_numbers<[1], [0], [0], [1], [0, 0, 1, 1], [], []>} : vector<16x8xf32>, vector<8x16xf32>, vector<16x16xf32> -> vector<16x16xf32>
    %105 = arith.addf %104, %23 : vector<16x16xf32>
    %cst_41 = arith.constant dense<0xFF800000> : vector<16xf32>
    %106 = vector.multi_reduction <maximumf>, %105, %cst_41 [1] : vector<16x16xf32> to vector<16xf32>
    %107 = vector.shape_cast %106 : vector<16xf32> to vector<16x1xf32>
    %108 = vector.broadcast %107 : vector<16x1xf32> to vector<16x16xf32>
    %109 = arith.subf %105, %108 : vector<16x16xf32>
    %110 = math.exp %109 : vector<16x16xf32>
    %cst_42 = arith.constant dense<0.000000e+00> : vector<16xf32>
    %111 = vector.multi_reduction <add>, %110, %cst_42 [1] : vector<16x16xf32> to vector<16xf32>
    %112 = vector.shape_cast %111 : vector<16xf32> to vector<16x1xf32>
    %113 = tpu.reciprocal %112 {approx = true} : vector<16x1xf32> -> vector<16x1xf32>
    %cst_43 = arith.constant dense<0.000000e+00> : vector<16x8xf32>
    %114 = tpu.matmul %110, %102, %cst_43 {dimension_numbers = #tpu.dot_dimension_numbers<[1], [0], [0], [1], [0, 0, 1, 1], [], []>} : vector<16x16xf32>, vector<16x8xf32>, vector<16x8xf32> -> vector<16x8xf32>
    %115 = vector.broadcast %113 : vector<16x1xf32> to vector<16x8xf32>
    %116 = arith.mulf %114, %115 : vector<16x8xf32>
    %117 = vector.extract_strided_slice %32 {offsets = [24, 0], sizes = [8, 32], strides = [1, 1]} : vector<32x32xf32> to vector<8x32xf32>
    %cst_44 = arith.constant dense<0.000000e+00> : vector<16x32xf32>
    %118 = tpu.matmul %116, %117, %cst_44 {dimension_numbers = #tpu.dot_dimension_numbers<[1], [0], [0], [1], [0, 0, 1, 1], [], []>} : vector<16x8xf32>, vector<8x32xf32>, vector<16x32xf32> -> vector<16x32xf32>
    %119 = arith.addf %97, %118 : vector<16x32xf32>
    %c0_45 = arith.constant 0 : index
    %c0_46 = arith.constant 0 : index
    %c0_47 = arith.constant 0 : index
    %120 = vector.load %arg7[%c0_45, %c0_46, %c0_47] : memref<2x1x32xf32, #tpu.memory_space<vmem>>, vector<1x1x32xf32>
    %121 = vector.shape_cast %120 : vector<1x1x32xf32> to vector<1x32xf32>
    %122 = vector.broadcast %121 : vector<1x32xf32> to vector<16x32xf32>
    %123 = arith.addf %119, %122 : vector<16x32xf32>
    %124 = arith.addf %123, %22 : vector<16x32xf32>
    %c0_48 = arith.constant 0 : index
    %c0_49 = arith.constant 0 : index
    %c0_50 = arith.constant 0 : index
    %125 = vector.load %arg8[%c0_48, %c0_49, %c0_50] : memref<2x1x32xf32, #tpu.memory_space<vmem>>, vector<1x1x32xf32>
    %126 = vector.shape_cast %125 : vector<1x1x32xf32> to vector<1x32xf32>
    %c0_51 = arith.constant 0 : index
    %c0_52 = arith.constant 0 : index
    %c0_53 = arith.constant 0 : index
    %127 = vector.load %arg9[%c0_51, %c0_52, %c0_53] : memref<2x1x32xf32, #tpu.memory_space<vmem>>, vector<1x1x32xf32>
    %128 = vector.shape_cast %127 : vector<1x1x32xf32> to vector<1x32xf32>
    %cst_54 = arith.constant dense<0.000000e+00> : vector<16xf32>
    %129 = vector.multi_reduction <add>, %124, %cst_54 [1] : vector<16x32xf32> to vector<16xf32>
    %130 = vector.shape_cast %129 : vector<16xf32> to vector<16x1xf32>
    %cst_55 = arith.constant 3.200000e+01 : f32
    %131 = vector.broadcast %cst_55 : f32 to vector<16x1xf32>
    %132 = arith.divf %130, %131 : vector<16x1xf32>
    %133 = vector.broadcast %132 : vector<16x1xf32> to vector<16x32xf32>
    %134 = arith.subf %124, %133 : vector<16x32xf32>
    %135 = arith.mulf %134, %134 : vector<16x32xf32>
    %cst_56 = arith.constant dense<0.000000e+00> : vector<16xf32>
    %136 = vector.multi_reduction <add>, %135, %cst_56 [1] : vector<16x32xf32> to vector<16xf32>
    %137 = vector.shape_cast %136 : vector<16xf32> to vector<16x1xf32>
    %cst_57 = arith.constant 3.200000e+01 : f32
    %138 = vector.broadcast %cst_57 : f32 to vector<16x1xf32>
    %139 = arith.divf %137, %138 : vector<16x1xf32>
    %cst_58 = arith.constant 9.99999996E-13 : f32
    %140 = vector.broadcast %cst_58 : f32 to vector<16x1xf32>
    %141 = arith.addf %139, %140 : vector<16x1xf32>
    %142 = math.rsqrt %141 : vector<16x1xf32>
    %143 = vector.broadcast %142 : vector<16x1xf32> to vector<16x32xf32>
    %144 = arith.mulf %134, %143 : vector<16x32xf32>
    %145 = vector.broadcast %126 : vector<1x32xf32> to vector<16x32xf32>
    %146 = arith.mulf %144, %145 : vector<16x32xf32>
    %147 = vector.broadcast %128 : vector<1x32xf32> to vector<16x32xf32>
    %148 = arith.addf %146, %147 : vector<16x32xf32>
    %c0_59 = arith.constant 0 : index
    %c0_60 = arith.constant 0 : index
    %c0_61 = arith.constant 0 : index
    %149 = vector.load %arg10[%c0_59, %c0_60, %c0_61] : memref<2x32x64xf32, #tpu.memory_space<vmem>>, vector<1x32x64xf32>
    %150 = vector.shape_cast %149 : vector<1x32x64xf32> to vector<32x64xf32>
    %cst_62 = arith.constant dense<0.000000e+00> : vector<16x64xf32>
    %151 = tpu.matmul %148, %150, %cst_62 {dimension_numbers = #tpu.dot_dimension_numbers<[1], [0], [0], [1], [0, 0, 1, 1], [], []>} : vector<16x32xf32>, vector<32x64xf32>, vector<16x64xf32> -> vector<16x64xf32>
    %c0_63 = arith.constant 0 : index
    %c0_64 = arith.constant 0 : index
    %c0_65 = arith.constant 0 : index
    %152 = vector.load %arg11[%c0_63, %c0_64, %c0_65] : memref<2x1x64xf32, #tpu.memory_space<vmem>>, vector<1x1x64xf32>
    %153 = vector.shape_cast %152 : vector<1x1x64xf32> to vector<1x64xf32>
    %154 = vector.broadcast %153 : vector<1x64xf32> to vector<16x64xf32>
    %155 = arith.addf %151, %154 : vector<16x64xf32>
    %cst_66 = arith.constant 5.000000e-01 : f32
    %156 = vector.broadcast %cst_66 : f32 to vector<16x64xf32>
    %157 = arith.mulf %156, %155 : vector<16x64xf32>
    %cst_67 = arith.constant 4.471500e-02 : f32
    %158 = vector.broadcast %cst_67 : f32 to vector<16x64xf32>
    %159 = arith.mulf %158, %155 : vector<16x64xf32>
    %160 = arith.mulf %159, %155 : vector<16x64xf32>
    %161 = arith.mulf %160, %155 : vector<16x64xf32>
    %162 = arith.addf %155, %161 : vector<16x64xf32>
    %cst_68 = arith.constant 0.797884583 : f32
    %163 = vector.broadcast %cst_68 : f32 to vector<16x64xf32>
    %164 = arith.mulf %163, %162 : vector<16x64xf32>
    %165 = math.tanh %164 : vector<16x64xf32>
    %cst_69 = arith.constant 1.000000e+00 : f32
    %166 = vector.broadcast %cst_69 : f32 to vector<16x64xf32>
    %167 = arith.addf %166, %165 : vector<16x64xf32>
    %168 = arith.mulf %157, %167 : vector<16x64xf32>
    %c0_70 = arith.constant 0 : index
    %c0_71 = arith.constant 0 : index
    %c0_72 = arith.constant 0 : index
    %169 = vector.load %arg12[%c0_70, %c0_71, %c0_72] : memref<2x64x32xf32, #tpu.memory_space<vmem>>, vector<1x64x32xf32>
    %170 = vector.shape_cast %169 : vector<1x64x32xf32> to vector<64x32xf32>
    %cst_73 = arith.constant dense<0.000000e+00> : vector<16x32xf32>
    %171 = tpu.matmul %168, %170, %cst_73 {dimension_numbers = #tpu.dot_dimension_numbers<[1], [0], [0], [1], [0, 0, 1, 1], [], []>} : vector<16x64xf32>, vector<64x32xf32>, vector<16x32xf32> -> vector<16x32xf32>
    %c0_74 = arith.constant 0 : index
    %c0_75 = arith.constant 0 : index
    %c0_76 = arith.constant 0 : index
    %172 = vector.load %arg13[%c0_74, %c0_75, %c0_76] : memref<2x1x32xf32, #tpu.memory_space<vmem>>, vector<1x1x32xf32>
    %173 = vector.shape_cast %172 : vector<1x1x32xf32> to vector<1x32xf32>
    %174 = vector.broadcast %173 : vector<1x32xf32> to vector<16x32xf32>
    %175 = arith.addf %171, %174 : vector<16x32xf32>
    %176 = arith.addf %175, %148 : vector<16x32xf32>
    %c0_77 = arith.constant 0 : index
    %c0_78 = arith.constant 0 : index
    %c0_79 = arith.constant 0 : index
    %177 = vector.load %arg14[%c0_77, %c0_78, %c0_79] : memref<2x1x32xf32, #tpu.memory_space<vmem>>, vector<1x1x32xf32>
    %178 = vector.shape_cast %177 : vector<1x1x32xf32> to vector<1x32xf32>
    %c0_80 = arith.constant 0 : index
    %c0_81 = arith.constant 0 : index
    %c0_82 = arith.constant 0 : index
    %179 = vector.load %arg15[%c0_80, %c0_81, %c0_82] : memref<2x1x32xf32, #tpu.memory_space<vmem>>, vector<1x1x32xf32>
    %180 = vector.shape_cast %179 : vector<1x1x32xf32> to vector<1x32xf32>
    %cst_83 = arith.constant dense<0.000000e+00> : vector<16xf32>
    %181 = vector.multi_reduction <add>, %176, %cst_83 [1] : vector<16x32xf32> to vector<16xf32>
    %182 = vector.shape_cast %181 : vector<16xf32> to vector<16x1xf32>
    %cst_84 = arith.constant 3.200000e+01 : f32
    %183 = vector.broadcast %cst_84 : f32 to vector<16x1xf32>
    %184 = arith.divf %182, %183 : vector<16x1xf32>
    %185 = vector.broadcast %184 : vector<16x1xf32> to vector<16x32xf32>
    %186 = arith.subf %176, %185 : vector<16x32xf32>
    %187 = arith.mulf %186, %186 : vector<16x32xf32>
    %cst_85 = arith.constant dense<0.000000e+00> : vector<16xf32>
    %188 = vector.multi_reduction <add>, %187, %cst_85 [1] : vector<16x32xf32> to vector<16xf32>
    %189 = vector.shape_cast %188 : vector<16xf32> to vector<16x1xf32>
    %cst_86 = arith.constant 3.200000e+01 : f32
    %190 = vector.broadcast %cst_86 : f32 to vector<16x1xf32>
    %191 = arith.divf %189, %190 : vector<16x1xf32>
    %cst_87 = arith.constant 9.99999996E-13 : f32
    %192 = vector.broadcast %cst_87 : f32 to vector<16x1xf32>
    %193 = arith.addf %191, %192 : vector<16x1xf32>
    %194 = math.rsqrt %193 : vector<16x1xf32>
    %195 = vector.broadcast %194 : vector<16x1xf32> to vector<16x32xf32>
    %196 = arith.mulf %186, %195 : vector<16x32xf32>
    %197 = vector.broadcast %178 : vector<1x32xf32> to vector<16x32xf32>
    %198 = arith.mulf %196, %197 : vector<16x32xf32>
    %199 = vector.broadcast %180 : vector<1x32xf32> to vector<16x32xf32>
    %200 = arith.addf %198, %199 : vector<16x32xf32>
    %c1 = arith.constant 1 : index
    %c0_88 = arith.constant 0 : index
    %c0_89 = arith.constant 0 : index
    %201 = vector.load %arg4[%c1, %c0_88, %c0_89] : memref<2x32x96xf32, #tpu.memory_space<vmem>>, vector<1x32x96xf32>
    %202 = vector.shape_cast %201 : vector<1x32x96xf32> to vector<32x96xf32>
    %cst_90 = arith.constant dense<0.000000e+00> : vector<16x96xf32>
    %203 = tpu.matmul %200, %202, %cst_90 {dimension_numbers = #tpu.dot_dimension_numbers<[1], [0], [0], [1], [0, 0, 1, 1], [], []>} : vector<16x32xf32>, vector<32x96xf32>, vector<16x96xf32> -> vector<16x96xf32>
    %c1_91 = arith.constant 1 : index
    %c0_92 = arith.constant 0 : index
    %c0_93 = arith.constant 0 : index
    %204 = vector.load %arg5[%c1_91, %c0_92, %c0_93] : memref<2x1x96xf32, #tpu.memory_space<vmem>>, vector<1x1x96xf32>
    %205 = vector.shape_cast %204 : vector<1x1x96xf32> to vector<1x96xf32>
    %206 = vector.broadcast %205 : vector<1x96xf32> to vector<16x96xf32>
    %207 = arith.addf %203, %206 : vector<16x96xf32>
    %c1_94 = arith.constant 1 : index
    %c0_95 = arith.constant 0 : index
    %c0_96 = arith.constant 0 : index
    %208 = vector.load %arg6[%c1_94, %c0_95, %c0_96] : memref<2x32x32xf32, #tpu.memory_space<vmem>>, vector<1x32x32xf32>
    %209 = vector.shape_cast %208 : vector<1x32x32xf32> to vector<32x32xf32>
    %210 = vector.extract_strided_slice %207 {offsets = [0, 0], sizes = [16, 8], strides = [1, 1]} : vector<16x96xf32> to vector<16x8xf32>
    %cst_97 = arith.constant 0.353553385 : f32
    %211 = vector.broadcast %cst_97 : f32 to vector<16x8xf32>
    %212 = arith.mulf %210, %211 : vector<16x8xf32>
    %213 = vector.extract_strided_slice %207 {offsets = [0, 32], sizes = [16, 8], strides = [1, 1]} : vector<16x96xf32> to vector<16x8xf32>
    %214 = vector.extract_strided_slice %207 {offsets = [0, 64], sizes = [16, 8], strides = [1, 1]} : vector<16x96xf32> to vector<16x8xf32>
    %215 = tpu.transpose %213, [1, 0] : vector<16x8xf32> -> vector<8x16xf32>
    %cst_98 = arith.constant dense<0.000000e+00> : vector<16x16xf32>
    %216 = tpu.matmul %212, %215, %cst_98 {dimension_numbers = #tpu.dot_dimension_numbers<[1], [0], [0], [1], [0, 0, 1, 1], [], []>} : vector<16x8xf32>, vector<8x16xf32>, vector<16x16xf32> -> vector<16x16xf32>
    %217 = arith.addf %216, %23 : vector<16x16xf32>
    %cst_99 = arith.constant dense<0xFF800000> : vector<16xf32>
    %218 = vector.multi_reduction <maximumf>, %217, %cst_99 [1] : vector<16x16xf32> to vector<16xf32>
    %219 = vector.shape_cast %218 : vector<16xf32> to vector<16x1xf32>
    %220 = vector.broadcast %219 : vector<16x1xf32> to vector<16x16xf32>
    %221 = arith.subf %217, %220 : vector<16x16xf32>
    %222 = math.exp %221 : vector<16x16xf32>
    %cst_100 = arith.constant dense<0.000000e+00> : vector<16xf32>
    %223 = vector.multi_reduction <add>, %222, %cst_100 [1] : vector<16x16xf32> to vector<16xf32>
    %224 = vector.shape_cast %223 : vector<16xf32> to vector<16x1xf32>
    %225 = tpu.reciprocal %224 {approx = true} : vector<16x1xf32> -> vector<16x1xf32>
    %cst_101 = arith.constant dense<0.000000e+00> : vector<16x8xf32>
    %226 = tpu.matmul %222, %214, %cst_101 {dimension_numbers = #tpu.dot_dimension_numbers<[1], [0], [0], [1], [0, 0, 1, 1], [], []>} : vector<16x16xf32>, vector<16x8xf32>, vector<16x8xf32> -> vector<16x8xf32>
    %227 = vector.broadcast %225 : vector<16x1xf32> to vector<16x8xf32>
    %228 = arith.mulf %226, %227 : vector<16x8xf32>
    %229 = vector.extract_strided_slice %209 {offsets = [0, 0], sizes = [8, 32], strides = [1, 1]} : vector<32x32xf32> to vector<8x32xf32>
    %cst_102 = arith.constant dense<0.000000e+00> : vector<16x32xf32>
    %230 = tpu.matmul %228, %229, %cst_102 {dimension_numbers = #tpu.dot_dimension_numbers<[1], [0], [0], [1], [0, 0, 1, 1], [], []>} : vector<16x8xf32>, vector<8x32xf32>, vector<16x32xf32> -> vector<16x32xf32>
    %231 = vector.extract_strided_slice %207 {offsets = [0, 8], sizes = [16, 8], strides = [1, 1]} : vector<16x96xf32> to vector<16x8xf32>
    %cst_103 = arith.constant 0.353553385 : f32
    %232 = vector.broadcast %cst_103 : f32 to vector<16x8xf32>
    %233 = arith.mulf %231, %232 : vector<16x8xf32>
    %234 = vector.extract_strided_slice %207 {offsets = [0, 40], sizes = [16, 8], strides = [1, 1]} : vector<16x96xf32> to vector<16x8xf32>
    %235 = vector.extract_strided_slice %207 {offsets = [0, 72], sizes = [16, 8], strides = [1, 1]} : vector<16x96xf32> to vector<16x8xf32>
    %236 = tpu.transpose %234, [1, 0] : vector<16x8xf32> -> vector<8x16xf32>
    %cst_104 = arith.constant dense<0.000000e+00> : vector<16x16xf32>
    %237 = tpu.matmul %233, %236, %cst_104 {dimension_numbers = #tpu.dot_dimension_numbers<[1], [0], [0], [1], [0, 0, 1, 1], [], []>} : vector<16x8xf32>, vector<8x16xf32>, vector<16x16xf32> -> vector<16x16xf32>
    %238 = arith.addf %237, %23 : vector<16x16xf32>
    %cst_105 = arith.constant dense<0xFF800000> : vector<16xf32>
    %239 = vector.multi_reduction <maximumf>, %238, %cst_105 [1] : vector<16x16xf32> to vector<16xf32>
    %240 = vector.shape_cast %239 : vector<16xf32> to vector<16x1xf32>
    %241 = vector.broadcast %240 : vector<16x1xf32> to vector<16x16xf32>
    %242 = arith.subf %238, %241 : vector<16x16xf32>
    %243 = math.exp %242 : vector<16x16xf32>
    %cst_106 = arith.constant dense<0.000000e+00> : vector<16xf32>
    %244 = vector.multi_reduction <add>, %243, %cst_106 [1] : vector<16x16xf32> to vector<16xf32>
    %245 = vector.shape_cast %244 : vector<16xf32> to vector<16x1xf32>
    %246 = tpu.reciprocal %245 {approx = true} : vector<16x1xf32> -> vector<16x1xf32>
    %cst_107 = arith.constant dense<0.000000e+00> : vector<16x8xf32>
    %247 = tpu.matmul %243, %235, %cst_107 {dimension_numbers = #tpu.dot_dimension_numbers<[1], [0], [0], [1], [0, 0, 1, 1], [], []>} : vector<16x16xf32>, vector<16x8xf32>, vector<16x8xf32> -> vector<16x8xf32>
    %248 = vector.broadcast %246 : vector<16x1xf32> to vector<16x8xf32>
    %249 = arith.mulf %247, %248 : vector<16x8xf32>
    %250 = vector.extract_strided_slice %209 {offsets = [8, 0], sizes = [8, 32], strides = [1, 1]} : vector<32x32xf32> to vector<8x32xf32>
    %cst_108 = arith.constant dense<0.000000e+00> : vector<16x32xf32>
    %251 = tpu.matmul %249, %250, %cst_108 {dimension_numbers = #tpu.dot_dimension_numbers<[1], [0], [0], [1], [0, 0, 1, 1], [], []>} : vector<16x8xf32>, vector<8x32xf32>, vector<16x32xf32> -> vector<16x32xf32>
    %252 = arith.addf %230, %251 : vector<16x32xf32>
    %253 = vector.extract_strided_slice %207 {offsets = [0, 16], sizes = [16, 8], strides = [1, 1]} : vector<16x96xf32> to vector<16x8xf32>
    %cst_109 = arith.constant 0.353553385 : f32
    %254 = vector.broadcast %cst_109 : f32 to vector<16x8xf32>
    %255 = arith.mulf %253, %254 : vector<16x8xf32>
    %256 = vector.extract_strided_slice %207 {offsets = [0, 48], sizes = [16, 8], strides = [1, 1]} : vector<16x96xf32> to vector<16x8xf32>
    %257 = vector.extract_strided_slice %207 {offsets = [0, 80], sizes = [16, 8], strides = [1, 1]} : vector<16x96xf32> to vector<16x8xf32>
    %258 = tpu.transpose %256, [1, 0] : vector<16x8xf32> -> vector<8x16xf32>
    %cst_110 = arith.constant dense<0.000000e+00> : vector<16x16xf32>
    %259 = tpu.matmul %255, %258, %cst_110 {dimension_numbers = #tpu.dot_dimension_numbers<[1], [0], [0], [1], [0, 0, 1, 1], [], []>} : vector<16x8xf32>, vector<8x16xf32>, vector<16x16xf32> -> vector<16x16xf32>
    %260 = arith.addf %259, %23 : vector<16x16xf32>
    %cst_111 = arith.constant dense<0xFF800000> : vector<16xf32>
    %261 = vector.multi_reduction <maximumf>, %260, %cst_111 [1] : vector<16x16xf32> to vector<16xf32>
    %262 = vector.shape_cast %261 : vector<16xf32> to vector<16x1xf32>
    %263 = vector.broadcast %262 : vector<16x1xf32> to vector<16x16xf32>
    %264 = arith.subf %260, %263 : vector<16x16xf32>
    %265 = math.exp %264 : vector<16x16xf32>
    %cst_112 = arith.constant dense<0.000000e+00> : vector<16xf32>
    %266 = vector.multi_reduction <add>, %265, %cst_112 [1] : vector<16x16xf32> to vector<16xf32>
    %267 = vector.shape_cast %266 : vector<16xf32> to vector<16x1xf32>
    %268 = tpu.reciprocal %267 {approx = true} : vector<16x1xf32> -> vector<16x1xf32>
    %cst_113 = arith.constant dense<0.000000e+00> : vector<16x8xf32>
    %269 = tpu.matmul %265, %257, %cst_113 {dimension_numbers = #tpu.dot_dimension_numbers<[1], [0], [0], [1], [0, 0, 1, 1], [], []>} : vector<16x16xf32>, vector<16x8xf32>, vector<16x8xf32> -> vector<16x8xf32>
    %270 = vector.broadcast %268 : vector<16x1xf32> to vector<16x8xf32>
    %271 = arith.mulf %269, %270 : vector<16x8xf32>
    %272 = vector.extract_strided_slice %209 {offsets = [16, 0], sizes = [8, 32], strides = [1, 1]} : vector<32x32xf32> to vector<8x32xf32>
    %cst_114 = arith.constant dense<0.000000e+00> : vector<16x32xf32>
    %273 = tpu.matmul %271, %272, %cst_114 {dimension_numbers = #tpu.dot_dimension_numbers<[1], [0], [0], [1], [0, 0, 1, 1], [], []>} : vector<16x8xf32>, vector<8x32xf32>, vector<16x32xf32> -> vector<16x32xf32>
    %274 = arith.addf %252, %273 : vector<16x32xf32>
    %275 = vector.extract_strided_slice %207 {offsets = [0, 24], sizes = [16, 8], strides = [1, 1]} : vector<16x96xf32> to vector<16x8xf32>
    %cst_115 = arith.constant 0.353553385 : f32
    %276 = vector.broadcast %cst_115 : f32 to vector<16x8xf32>
    %277 = arith.mulf %275, %276 : vector<16x8xf32>
    %278 = vector.extract_strided_slice %207 {offsets = [0, 56], sizes = [16, 8], strides = [1, 1]} : vector<16x96xf32> to vector<16x8xf32>
    %279 = vector.extract_strided_slice %207 {offsets = [0, 88], sizes = [16, 8], strides = [1, 1]} : vector<16x96xf32> to vector<16x8xf32>
    %280 = tpu.transpose %278, [1, 0] : vector<16x8xf32> -> vector<8x16xf32>
    %cst_116 = arith.constant dense<0.000000e+00> : vector<16x16xf32>
    %281 = tpu.matmul %277, %280, %cst_116 {dimension_numbers = #tpu.dot_dimension_numbers<[1], [0], [0], [1], [0, 0, 1, 1], [], []>} : vector<16x8xf32>, vector<8x16xf32>, vector<16x16xf32> -> vector<16x16xf32>
    %282 = arith.addf %281, %23 : vector<16x16xf32>
    %cst_117 = arith.constant dense<0xFF800000> : vector<16xf32>
    %283 = vector.multi_reduction <maximumf>, %282, %cst_117 [1] : vector<16x16xf32> to vector<16xf32>
    %284 = vector.shape_cast %283 : vector<16xf32> to vector<16x1xf32>
    %285 = vector.broadcast %284 : vector<16x1xf32> to vector<16x16xf32>
    %286 = arith.subf %282, %285 : vector<16x16xf32>
    %287 = math.exp %286 : vector<16x16xf32>
    %cst_118 = arith.constant dense<0.000000e+00> : vector<16xf32>
    %288 = vector.multi_reduction <add>, %287, %cst_118 [1] : vector<16x16xf32> to vector<16xf32>
    %289 = vector.shape_cast %288 : vector<16xf32> to vector<16x1xf32>
    %290 = tpu.reciprocal %289 {approx = true} : vector<16x1xf32> -> vector<16x1xf32>
    %cst_119 = arith.constant dense<0.000000e+00> : vector<16x8xf32>
    %291 = tpu.matmul %287, %279, %cst_119 {dimension_numbers = #tpu.dot_dimension_numbers<[1], [0], [0], [1], [0, 0, 1, 1], [], []>} : vector<16x16xf32>, vector<16x8xf32>, vector<16x8xf32> -> vector<16x8xf32>
    %292 = vector.broadcast %290 : vector<16x1xf32> to vector<16x8xf32>
    %293 = arith.mulf %291, %292 : vector<16x8xf32>
    %294 = vector.extract_strided_slice %209 {offsets = [24, 0], sizes = [8, 32], strides = [1, 1]} : vector<32x32xf32> to vector<8x32xf32>
    %cst_120 = arith.constant dense<0.000000e+00> : vector<16x32xf32>
    %295 = tpu.matmul %293, %294, %cst_120 {dimension_numbers = #tpu.dot_dimension_numbers<[1], [0], [0], [1], [0, 0, 1, 1], [], []>} : vector<16x8xf32>, vector<8x32xf32>, vector<16x32xf32> -> vector<16x32xf32>
    %296 = arith.addf %274, %295 : vector<16x32xf32>
    %c1_121 = arith.constant 1 : index
    %c0_122 = arith.constant 0 : index
    %c0_123 = arith.constant 0 : index
    %297 = vector.load %arg7[%c1_121, %c0_122, %c0_123] : memref<2x1x32xf32, #tpu.memory_space<vmem>>, vector<1x1x32xf32>
    %298 = vector.shape_cast %297 : vector<1x1x32xf32> to vector<1x32xf32>
    %299 = vector.broadcast %298 : vector<1x32xf32> to vector<16x32xf32>
    %300 = arith.addf %296, %299 : vector<16x32xf32>
    %301 = arith.addf %300, %200 : vector<16x32xf32>
    %c1_124 = arith.constant 1 : index
    %c0_125 = arith.constant 0 : index
    %c0_126 = arith.constant 0 : index
    %302 = vector.load %arg8[%c1_124, %c0_125, %c0_126] : memref<2x1x32xf32, #tpu.memory_space<vmem>>, vector<1x1x32xf32>
    %303 = vector.shape_cast %302 : vector<1x1x32xf32> to vector<1x32xf32>
    %c1_127 = arith.constant 1 : index
    %c0_128 = arith.constant 0 : index
    %c0_129 = arith.constant 0 : index
    %304 = vector.load %arg9[%c1_127, %c0_128, %c0_129] : memref<2x1x32xf32, #tpu.memory_space<vmem>>, vector<1x1x32xf32>
    %305 = vector.shape_cast %304 : vector<1x1x32xf32> to vector<1x32xf32>
    %cst_130 = arith.constant dense<0.000000e+00> : vector<16xf32>
    %306 = vector.multi_reduction <add>, %301, %cst_130 [1] : vector<16x32xf32> to vector<16xf32>
    %307 = vector.shape_cast %306 : vector<16xf32> to vector<16x1xf32>
    %cst_131 = arith.constant 3.200000e+01 : f32
    %308 = vector.broadcast %cst_131 : f32 to vector<16x1xf32>
    %309 = arith.divf %307, %308 : vector<16x1xf32>
    %310 = vector.broadcast %309 : vector<16x1xf32> to vector<16x32xf32>
    %311 = arith.subf %301, %310 : vector<16x32xf32>
    %312 = arith.mulf %311, %311 : vector<16x32xf32>
    %cst_132 = arith.constant dense<0.000000e+00> : vector<16xf32>
    %313 = vector.multi_reduction <add>, %312, %cst_132 [1] : vector<16x32xf32> to vector<16xf32>
    %314 = vector.shape_cast %313 : vector<16xf32> to vector<16x1xf32>
    %cst_133 = arith.constant 3.200000e+01 : f32
    %315 = vector.broadcast %cst_133 : f32 to vector<16x1xf32>
    %316 = arith.divf %314, %315 : vector<16x1xf32>
    %cst_134 = arith.constant 9.99999996E-13 : f32
    %317 = vector.broadcast %cst_134 : f32 to vector<16x1xf32>
    %318 = arith.addf %316, %317 : vector<16x1xf32>
    %319 = math.rsqrt %318 : vector<16x1xf32>
    %320 = vector.broadcast %319 : vector<16x1xf32> to vector<16x32xf32>
    %321 = arith.mulf %311, %320 : vector<16x32xf32>
    %322 = vector.broadcast %303 : vector<1x32xf32> to vector<16x32xf32>
    %323 = arith.mulf %321, %322 : vector<16x32xf32>
    %324 = vector.broadcast %305 : vector<1x32xf32> to vector<16x32xf32>
    %325 = arith.addf %323, %324 : vector<16x32xf32>
    %c1_135 = arith.constant 1 : index
    %c0_136 = arith.constant 0 : index
    %c0_137 = arith.constant 0 : index
    %326 = vector.load %arg10[%c1_135, %c0_136, %c0_137] : memref<2x32x64xf32, #tpu.memory_space<vmem>>, vector<1x32x64xf32>
    %327 = vector.shape_cast %326 : vector<1x32x64xf32> to vector<32x64xf32>
    %cst_138 = arith.constant dense<0.000000e+00> : vector<16x64xf32>
    %328 = tpu.matmul %325, %327, %cst_138 {dimension_numbers = #tpu.dot_dimension_numbers<[1], [0], [0], [1], [0, 0, 1, 1], [], []>} : vector<16x32xf32>, vector<32x64xf32>, vector<16x64xf32> -> vector<16x64xf32>
    %c1_139 = arith.constant 1 : index
    %c0_140 = arith.constant 0 : index
    %c0_141 = arith.constant 0 : index
    %329 = vector.load %arg11[%c1_139, %c0_140, %c0_141] : memref<2x1x64xf32, #tpu.memory_space<vmem>>, vector<1x1x64xf32>
    %330 = vector.shape_cast %329 : vector<1x1x64xf32> to vector<1x64xf32>
    %331 = vector.broadcast %330 : vector<1x64xf32> to vector<16x64xf32>
    %332 = arith.addf %328, %331 : vector<16x64xf32>
    %cst_142 = arith.constant 5.000000e-01 : f32
    %333 = vector.broadcast %cst_142 : f32 to vector<16x64xf32>
    %334 = arith.mulf %333, %332 : vector<16x64xf32>
    %cst_143 = arith.constant 4.471500e-02 : f32
    %335 = vector.broadcast %cst_143 : f32 to vector<16x64xf32>
    %336 = arith.mulf %335, %332 : vector<16x64xf32>
    %337 = arith.mulf %336, %332 : vector<16x64xf32>
    %338 = arith.mulf %337, %332 : vector<16x64xf32>
    %339 = arith.addf %332, %338 : vector<16x64xf32>
    %cst_144 = arith.constant 0.797884583 : f32
    %340 = vector.broadcast %cst_144 : f32 to vector<16x64xf32>
    %341 = arith.mulf %340, %339 : vector<16x64xf32>
    %342 = math.tanh %341 : vector<16x64xf32>
    %cst_145 = arith.constant 1.000000e+00 : f32
    %343 = vector.broadcast %cst_145 : f32 to vector<16x64xf32>
    %344 = arith.addf %343, %342 : vector<16x64xf32>
    %345 = arith.mulf %334, %344 : vector<16x64xf32>
    %c1_146 = arith.constant 1 : index
    %c0_147 = arith.constant 0 : index
    %c0_148 = arith.constant 0 : index
    %346 = vector.load %arg12[%c1_146, %c0_147, %c0_148] : memref<2x64x32xf32, #tpu.memory_space<vmem>>, vector<1x64x32xf32>
    %347 = vector.shape_cast %346 : vector<1x64x32xf32> to vector<64x32xf32>
    %cst_149 = arith.constant dense<0.000000e+00> : vector<16x32xf32>
    %348 = tpu.matmul %345, %347, %cst_149 {dimension_numbers = #tpu.dot_dimension_numbers<[1], [0], [0], [1], [0, 0, 1, 1], [], []>} : vector<16x64xf32>, vector<64x32xf32>, vector<16x32xf32> -> vector<16x32xf32>
    %c1_150 = arith.constant 1 : index
    %c0_151 = arith.constant 0 : index
    %c0_152 = arith.constant 0 : index
    %349 = vector.load %arg13[%c1_150, %c0_151, %c0_152] : memref<2x1x32xf32, #tpu.memory_space<vmem>>, vector<1x1x32xf32>
    %350 = vector.shape_cast %349 : vector<1x1x32xf32> to vector<1x32xf32>
    %351 = vector.broadcast %350 : vector<1x32xf32> to vector<16x32xf32>
    %352 = arith.addf %348, %351 : vector<16x32xf32>
    %353 = arith.addf %352, %325 : vector<16x32xf32>
    %c1_153 = arith.constant 1 : index
    %c0_154 = arith.constant 0 : index
    %c0_155 = arith.constant 0 : index
    %354 = vector.load %arg14[%c1_153, %c0_154, %c0_155] : memref<2x1x32xf32, #tpu.memory_space<vmem>>, vector<1x1x32xf32>
    %355 = vector.shape_cast %354 : vector<1x1x32xf32> to vector<1x32xf32>
    %c1_156 = arith.constant 1 : index
    %c0_157 = arith.constant 0 : index
    %c0_158 = arith.constant 0 : index
    %356 = vector.load %arg15[%c1_156, %c0_157, %c0_158] : memref<2x1x32xf32, #tpu.memory_space<vmem>>, vector<1x1x32xf32>
    %357 = vector.shape_cast %356 : vector<1x1x32xf32> to vector<1x32xf32>
    %cst_159 = arith.constant dense<0.000000e+00> : vector<16xf32>
    %358 = vector.multi_reduction <add>, %353, %cst_159 [1] : vector<16x32xf32> to vector<16xf32>
    %359 = vector.shape_cast %358 : vector<16xf32> to vector<16x1xf32>
    %cst_160 = arith.constant 3.200000e+01 : f32
    %360 = vector.broadcast %cst_160 : f32 to vector<16x1xf32>
    %361 = arith.divf %359, %360 : vector<16x1xf32>
    %362 = vector.broadcast %361 : vector<16x1xf32> to vector<16x32xf32>
    %363 = arith.subf %353, %362 : vector<16x32xf32>
    %364 = arith.mulf %363, %363 : vector<16x32xf32>
    %cst_161 = arith.constant dense<0.000000e+00> : vector<16xf32>
    %365 = vector.multi_reduction <add>, %364, %cst_161 [1] : vector<16x32xf32> to vector<16xf32>
    %366 = vector.shape_cast %365 : vector<16xf32> to vector<16x1xf32>
    %cst_162 = arith.constant 3.200000e+01 : f32
    %367 = vector.broadcast %cst_162 : f32 to vector<16x1xf32>
    %368 = arith.divf %366, %367 : vector<16x1xf32>
    %cst_163 = arith.constant 9.99999996E-13 : f32
    %369 = vector.broadcast %cst_163 : f32 to vector<16x1xf32>
    %370 = arith.addf %368, %369 : vector<16x1xf32>
    %371 = math.rsqrt %370 : vector<16x1xf32>
    %372 = vector.broadcast %371 : vector<16x1xf32> to vector<16x32xf32>
    %373 = arith.mulf %363, %372 : vector<16x32xf32>
    %374 = vector.broadcast %355 : vector<1x32xf32> to vector<16x32xf32>
    %375 = arith.mulf %373, %374 : vector<16x32xf32>
    %376 = vector.broadcast %357 : vector<1x32xf32> to vector<16x32xf32>
    %377 = arith.addf %375, %376 : vector<16x32xf32>
    %378 = tpu.iota {dimensions = array<i32: 1>} : vector<2x16xi32>
    %379 = tpu.iota {dimensions = array<i32: 0>} : vector<2x16xi32>
    %c8_i32 = arith.constant 8 : i32
    %380 = vector.broadcast %c8_i32 : i32 to vector<2x16xi32>
    %381 = arith.muli %379, %380 : vector<2x16xi32>
    %382 = arith.cmpi eq, %378, %381 : vector<2x16xi32>
    %383 = arith.extui %382 : vector<2x16xi1> to vector<2x16xi32>
    %384 = arith.sitofp %383 : vector<2x16xi32> to vector<2x16xf32>
    %cst_164 = arith.constant dense<0.000000e+00> : vector<2x32xf32>
    %385 = tpu.matmul %384, %377, %cst_164 {dimension_numbers = #tpu.dot_dimension_numbers<[1], [0], [0], [1], [0, 0, 1, 1], [], []>} : vector<2x16xf32>, vector<16x32xf32>, vector<2x32xf32> -> vector<2x32xf32>
    %c0_165 = arith.constant 0 : index
    %c0_166 = arith.constant 0 : index
    %386 = vector.load %arg16[%c0_165, %c0_166] : memref<32x32xf32, #tpu.memory_space<vmem>>, vector<32x32xf32>
    %cst_167 = arith.constant dense<0.000000e+00> : vector<2x32xf32>
    %387 = tpu.matmul %385, %386, %cst_167 {dimension_numbers = #tpu.dot_dimension_numbers<[1], [0], [0], [1], [0, 0, 1, 1], [], []>} : vector<2x32xf32>, vector<32x32xf32>, vector<2x32xf32> -> vector<2x32xf32>
    %c0_168 = arith.constant 0 : index
    %c0_169 = arith.constant 0 : index
    %388 = vector.load %arg17[%c0_168, %c0_169] : memref<1x32xf32, #tpu.memory_space<vmem>>, vector<1x32xf32>
    %389 = vector.broadcast %388 : vector<1x32xf32> to vector<2x32xf32>
    %390 = arith.addf %387, %389 : vector<2x32xf32>
    %391 = math.tanh %390 : vector<2x32xf32>
    %c0_170 = arith.constant 0 : index
    %c0_171 = arith.constant 0 : index
    %392 = vector.load %arg18[%c0_170, %c0_171] : memref<32x4xf32, #tpu.memory_space<vmem>>, vector<32x4xf32>
    %cst_172 = arith.constant dense<0.000000e+00> : vector<2x4xf32>
    %393 = tpu.matmul %391, %392, %cst_172 {dimension_numbers = #tpu.dot_dimension_numbers<[1], [0], [0], [1], [0, 0, 1, 1], [], []>} : vector<2x32xf32>, vector<32x4xf32>, vector<2x4xf32> -> vector<2x4xf32>
    %c0_173 = arith.constant 0 : index
    %c0_174 = arith.constant 0 : index
    %394 = vector.load %arg19[%c0_173, %c0_174] : memref<1x4xf32, #tpu.memory_space<vmem>>, vector<1x4xf32>
    %395 = vector.broadcast %394 : vector<1x4xf32> to vector<2x4xf32>
    %396 = arith.addf %393, %395 : vector<2x4xf32>
    %c0_175 = arith.constant 0 : index
    %c0_176 = arith.constant 0 : index
    %397 = vector.load %arg20[%c0_175, %c0_176] : memref<2x4xf32, #tpu.memory_space<vmem>>, vector<2x4xf32>
    tpu.vector_store %arg20[%c0_175, %c0_176], %396 {strides = array<i32>} : memref<2x4xf32, #tpu.memory_space<vmem>>, vector<2x4xf32>,
    return
  }
}

</mosaic_0001>

<llo_original>
// kernel: _forward_jit.1
$region0: #{_forward_jit.1}
  #allocation0 [shape = 'u32[]', space=smem, size = 0x4, offset = 0x4, fixed_abs, tag = 'smem constant byte address 0x4 - core index']
  #allocation1 [shape = 'u32[72,128]{1,0:T(1,128)}', space=vmem, size = 0x9000, scoped, tag = 'internal scratch']
  %s0 = inlined_call_operand.vmem [shape: f32[16,32], index: 0, kind: input, shape index: {}]
  %s1 = inlined_call_operand.vmem [shape: f32[16,16], index: 1, kind: input, shape index: {}]
  %s2 = inlined_call_operand.vmem [shape: f32[1,32], index: 2, kind: input, shape index: {}]
  %s3 = inlined_call_operand.vmem [shape: f32[1,32], index: 3, kind: input, shape index: {}]
  %s4 = inlined_call_operand.vmem [shape: f32[2,32,96], index: 4, kind: input, shape index: {}]
  %s5 = inlined_call_operand.vmem [shape: f32[2,1,96], index: 5, kind: input, shape index: {}]
  %s6 = inlined_call_operand.vmem [shape: f32[2,32,32], index: 6, kind: input, shape index: {}]
  %s7 = inlined_call_operand.vmem [shape: f32[2,1,32], index: 7, kind: input, shape index: {}]
  %s8 = inlined_call_operand.vmem [shape: f32[2,1,32], index: 8, kind: input, shape index: {}]
  %s9 = inlined_call_operand.vmem [shape: f32[2,1,32], index: 9, kind: input, shape index: {}]
  %s10 = inlined_call_operand.vmem [shape: f32[2,32,64], index: 10, kind: input, shape index: {}]
  %s11 = inlined_call_operand.vmem [shape: f32[2,1,64], index: 11, kind: input, shape index: {}]
  %s12 = inlined_call_operand.vmem [shape: f32[2,64,32], index: 12, kind: input, shape index: {}]
  %s13 = inlined_call_operand.vmem [shape: f32[2,1,32], index: 13, kind: input, shape index: {}]
  %s14 = inlined_call_operand.vmem [shape: f32[2,1,32], index: 14, kind: input, shape index: {}]
  %s15 = inlined_call_operand.vmem [shape: f32[2,1,32], index: 15, kind: input, shape index: {}]
  %s16 = inlined_call_operand.vmem [shape: f32[32,32], index: 16, kind: input, shape index: {}]
  %s17 = inlined_call_operand.vmem [shape: f32[1,32], index: 17, kind: input, shape index: {}]
  %s18 = inlined_call_operand.vmem [shape: f32[32,4], index: 18, kind: input, shape index: {}]
  %s19 = inlined_call_operand.vmem [shape: f32[1,4], index: 19, kind: input, shape index: {}]
  %s20 = inlined_call_operand.hbm [shape: f32[2,4], index: 20, kind: output, shape index: {}]
  %s21 = sld [smem:[#allocation0]]
  $region90: #{_forward_jit.1} parent=0
    _
  %s23 = ssub.s32 1, %s21
  %s24 = scalar_select 0, %s23, %s21
  $region1: #{_forward_jit.1} parent=0
    #allocation2 [shape = 'u8[1024]{0}', space=vmem, size = 0x400, scoped, tag = 'output window, operand 0, single buffered']
    #allocation3 [shape = 's32[1]{0}', space=sflag, size = 0x4, scoped, tag = 'scoped memory for _forward_jit.1']
    %25 = vsyncpa [#allocation3], 0
    // Predicated region
    $region2: #{_forward_jit.1} parent=1 // pred_check
      _
    $region3: #{_forward_jit.1} parent=1 // pred_check_branch
      %27 = sbr.rel (0) target = $region5
    $region4: #{_forward_jit.1} parent=1 // pred_region
      _
    $region5: #{_forward_jit.1} parent=1 // pred_fallthru
      _
    // Predicated region
    $region6: #{_forward_jit.1} parent=1 // pred_check
      _
    $region7: #{_forward_jit.1} parent=1 // pred_check_branch
      %29 = sbr.rel (0) target = $region9
    $region8: #{_forward_jit.1} parent=1 // pred_region
      _
    $region9: #{_forward_jit.1} parent=1 // pred_fallthru
      _
    // Predicated region
    $region10: #{_forward_jit.1} parent=1 // pred_check
      _
    $region11: #{_forward_jit.1} parent=1 // pred_check_branch
      %31 = sbr.rel (0) target = $region13
    $region12: #{_forward_jit.1} parent=1 // pred_region
      _
    $region13: #{_forward_jit.1} parent=1 // pred_fallthru
      _
    // Predicated region
    $region14: #{_forward_jit.1} parent=1 // pred_check
      _
    $region15: #{_forward_jit.1} parent=1 // pred_check_branch
      %33 = sbr.rel (0) target = $region17
    $region16: #{_forward_jit.1} parent=1 // pred_region
      _
    $region17: #{_forward_jit.1} parent=1 // pred_fallthru
      _
    // Predicated region
    $region18: #{_forward_jit.1} parent=1 // pred_check
      _
    $region19: #{_forward_jit.1} parent=1 // pred_check_branch
      %35 = sbr.rel (0) target = $region21
    $region20: #{_forward_jit.1} parent=1 // pred_region
      _
    $region21: #{_forward_jit.1} parent=1 // pred_fallthru
      _
    // Predicated region
    $region22: #{_forward_jit.1} parent=1 // pred_check
      _
    $region23: #{_forward_jit.1} parent=1 // pred_check_branch
      %37 = sbr.rel (0) target = $region25
    $region24: #{_forward_jit.1} parent=1 // pred_region
      _
    $region25: #{_forward_jit.1} parent=1 // pred_fallthru
      _
    // Predicated region
    $region26: #{_forward_jit.1} parent=1 // pred_check
      _
    $region27: #{_forward_jit.1} parent=1 // pred_check_branch
      %39 = sbr.rel (0) target = $region29
    $region28: #{_forward_jit.1} parent=1 // pred_region
      _
    $region29: #{_forward_jit.1} parent=1 // pred_fallthru
      _
    // Predicated region
    $region30: #{_forward_jit.1} parent=1 // pred_check
      _
    $region31: #{_forward_jit.1} parent=1 // pred_check_branch
      %41 = sbr.rel (0) target = $region33
    $region32: #{_forward_jit.1} parent=1 // pred_region
      _
    $region33: #{_forward_jit.1} parent=1 // pred_fallthru
      _
    // Predicated region
    $region34: #{_forward_jit.1} parent=1 // pred_check
      _
    $region35: #{_forward_jit.1} parent=1 // pred_check_branch
      %43 = sbr.rel (0) target = $region37
    $region36: #{_forward_jit.1} parent=1 // pred_region
      _
    $region37: #{_forward_jit.1} parent=1 // pred_fallthru
      _
    // Predicated region
    $region38: #{_forward_jit.1} parent=1 // pred_check
      _
    $region39: #{_forward_jit.1} parent=1 // pred_check_branch
      %45 = sbr.rel (0) target = $region41
    $region40: #{_forward_jit.1} parent=1 // pred_region
      _
    $region41: #{_forward_jit.1} parent=1 // pred_fallthru
      _
    // Predicated region
    $region42: #{_forward_jit.1} parent=1 // pred_check
      _
    $region43: #{_forward_jit.1} parent=1 // pred_check_branch
      %47 = sbr.rel (0) target = $region45
    $region44: #{_forward_jit.1} parent=1 // pred_region
      _
    $region45: #{_forward_jit.1} parent=1 // pred_fallthru
      _
    // Predicated region
    $region46: #{_forward_jit.1} parent=1 // pred_check
      _
    $region47: #{_forward_jit.1} parent=1 // pred_check_branch
      %49 = sbr.rel (0) target = $region49
    $region48: #{_forward_jit.1} parent=1 // pred_region
      _
    $region49: #{_forward_jit.1} parent=1 // pred_fallthru
      _
    // Predicated region
    $region50: #{_forward_jit.1} parent=1 // pred_check
      _
    $region51: #{_forward_jit.1} parent=1 // pred_check_branch
      %51 = sbr.rel (0) target = $region53
    $region52: #{_forward_jit.1} parent=1 // pred_region
      _
    $region53: #{_forward_jit.1} parent=1 // pred_fallthru
      _
    // Predicated region
    $region54: #{_forward_jit.1} parent=1 // pred_check
      _
    $region55: #{_forward_jit.1} parent=1 // pred_check_branch
      %53 = sbr.rel (0) target = $region57
    $region56: #{_forward_jit.1} parent=1 // pred_region
      _
    $region57: #{_forward_jit.1} parent=1 // pred_fallthru
      _
    // Predicated region
    $region58: #{_forward_jit.1} parent=1 // pred_check
      _
    $region59: #{_forward_jit.1} parent=1 // pred_check_branch
      %55 = sbr.rel (0) target = $region61
    $region60: #{_forward_jit.1} parent=1 // pred_region
      _
    $region61: #{_forward_jit.1} parent=1 // pred_fallthru
      _
    // Predicated region
    $region62: #{_forward_jit.1} parent=1 // pred_check
      _
    $region63: #{_forward_jit.1} parent=1 // pred_check_branch
      %57 = sbr.rel (0) target = $region65
    $region64: #{_forward_jit.1} parent=1 // pred_region
      _
    $region65: #{_forward_jit.1} parent=1 // pred_fallthru
      _
    // Predicated region
    $region66: #{_forward_jit.1} parent=1 // pred_check
      _
    $region67: #{_forward_jit.1} parent=1 // pred_check_branch
      %59 = sbr.rel (0) target = $region69
    $region68: #{_forward_jit.1} parent=1 // pred_region
      _
    $region69: #{_forward_jit.1} parent=1 // pred_fallthru
      _
    // Predicated region
    $region70: #{_forward_jit.1} parent=1 // pred_check
      _
    $region71: #{_forward_jit.1} parent=1 // pred_check_branch
      %61 = sbr.rel (0) target = $region73
    $region72: #{_forward_jit.1} parent=1 // pred_region
      _
    $region73: #{_forward_jit.1} parent=1 // pred_fallthru
      _
    // Predicated region
    $region74: #{_forward_jit.1} parent=1 // pred_check
      _
    $region75: #{_forward_jit.1} parent=1 // pred_check_branch
      %63 = sbr.rel (0) target = $region77
    $region76: #{_forward_jit.1} parent=1 // pred_region
      _
    $region77: #{_forward_jit.1} parent=1 // pred_fallthru
      _
    // Predicated region
    $region78: #{_forward_jit.1} parent=1 // pred_check
      _
    $region79: #{_forward_jit.1} parent=1 // pred_check_branch
      %65 = sbr.rel (0) target = $region81
    $region80: #{_forward_jit.1} parent=1 // pred_region
      _
    $region81: #{_forward_jit.1} parent=1 // pred_fallthru
      _
    %v66 = vld [vmem:[%s0] sm:$0xff]
    %v67 = vld [vmem:[%s0 + $0x8] sm:$0xff]
    %v68 = vld [vmem:[%s2] sm:$0x1]
    %v69 = vld [vmem:[%s3] sm:$0x1]
    %vm70 = vcmask 261120
    %v71 = vsel %vm70, %v66, 0.0
    %72 = vadd.xlane.f32.xlu0 %v71
    %v73 = vpop.xlane.xlu0 %72
    %v74 = vsel %vm70, %v67, 0.0
    %75 = vadd.xlane.f32.xlu0 %v74
    %v76 = vpop.xlane.xlu0 %75
    %v77 = vrcp.pop 32.0
    %v78 = vmul.f32 32.0, %v77
    %v79 = vsub.f32 1.0, %v78
    %v80 = vmul.f32 %v77, %v79
    %v81 = vadd.f32 %v77, %v80
    %vm82 = vweird.f32 %v77
    %v83 = vsel %vm82, %v77, %v81
    %v84 = vmul.f32 %v73, %v83
    %v85 = vmul.f32 %v76, %v83
    %v86 = vsub.f32 %v66, %v84
    %v87 = vsub.f32 %v67, %v85
    %v88 = vmul.f32 %v86, %v86
    %v89 = vmul.f32 %v87, %v87
    %v90 = vsel %vm70, %v88, 0.0
    %91 = vadd.xlane.f32.xlu0 %v90
    %v92 = vpop.xlane.xlu0 %91
    %v93 = vsel %vm70, %v89, 0.0
    %94 = vadd.xlane.f32.xlu0 %v93
    %v95 = vpop.xlane.xlu0 %94
    %v96 = vmul.f32 %v92, %v83
    %v97 = vmul.f32 %v95, %v83
    %v98 = vadd.f32 %v96, 1e-12
    %v99 = vadd.f32 %v97, 1e-12
    %v100 = vrsqrt.pop %v98
    %v101 = vmul.f32 %v100, %v98
    %v102 = vmul.f32 %v101, %v100
    %v103 = vmul.f32 0.5, %v102
    %v104 = vsub.f32 1.5, %v103
    %v105 = vmul.f32 %v100, %v104
    %vm106 = vweird.f32 %v98
    %vm107 = vweird.f32 %v100
    %vm108 = vmor %vm106, %vm107
    %v109 = vsel %vm108, %v100, %v105
    %v110 = vrsqrt.pop %v99
    %v111 = vmul.f32 %v110, %v99
    %v112 = vmul.f32 %v111, %v110
    %v113 = vmul.f32 0.5, %v112
    %v114 = vsub.f32 1.5, %v113
    %v115 = vmul.f32 %v110, %v114
    %vm116 = vweird.f32 %v99
    %vm117 = vweird.f32 %v110
    %vm118 = vmor %vm116, %vm117
    %v119 = vsel %vm118, %v110, %v115
    %v120 = vmul.f32 %v86, %v109
    %v121 = vmul.f32 %v87, %v119
    %v123 = vperm.slane %v68, 0
    %v125 = vmul.f32 %v120, %v123
    %v126 = vmul.f32 %v121, %v123
    %v128 = vperm.slane %v69, 0
    %v130 = vadd.f32 %v125, %v128
    %v131 = vadd.f32 %v126, %v128
    %v132 = vld [vmem:[%s1] sm:$0xff]
    %v133 = vld [vmem:[%s1 + $0x8] sm:$0xff]
    %v134 = vld [vmem:[%s4] sm:$0xff]
    %v135 = vld [vmem:[%s4 + $0x8] sm:$0xff]
    %v136 = vld [vmem:[%s4 + $0x10] sm:$0xff]
    %v137 = vld [vmem:[%s4 + $0x18] sm:$0xff]
    %v138 = vld [vmem:[%s5] sm:$0x1]
    %v140 = vperm.slane %v138, 0
    %v143 = vsel %vm70, %v130, 0
    %v146 = vsel %vm70, %v131, 0
    %148 = vmatpush.msra.mxu0 0.0
    %149 = vmatpush.msra.mxu0 0.0
    %150 = vmatpush.msra.mxu0 0.0
    %151 = vmatpush.msra.mxu0 0.0
    %152 = vmatpush.msra.mxu0 0.0
    %153 = vmatpush.msra.mxu0 0.0
    %154 = vmatpush.msra.mxu0 0.0
    %155 = vmatpush.msra.mxu0 0.0
    %156 = vmatpush.msra.mxu0 0.0
    %157 = vmatpush.msra.mxu0 0.0
    %158 = vmatpush.msra.mxu0 0.0
    %159 = vmatpush.msra.mxu0 0.0
    %160 = vmatpush.msra.mxu0 %v137
    %161 = vmatpush.msra.mxu0 %v136
    %162 = vmatpush.msra.mxu0 %v135
    %163 = vmatpush.msra.mxu0 %v134
    %164 = vmatmul.f32.gmra.mxu0 %v143
    %v165 = vpop.f32.mrf.mxu0
    %v166 = vadd.f32 %v140, %v165
    %167 = vmatmul.f32.gmra.mxu0 %v146
    %v168 = vpop.f32.mrf.mxu0
    %v169 = vadd.f32 %v140, %v168
    %170 = vdwg.mxu0
    %v171 = vld [vmem:[%s6] sm:$0xff]
    %v172 = vld [vmem:[%s6 + $0x8] sm:$0xff]
    %v173 = vld [vmem:[%s6 + $0x10] sm:$0xff]
    %v174 = vld [vmem:[%s6 + $0x18] sm:$0xff]
    %v175 = vmul.f32 %v166, 0.35355338
    %v176 = vmul.f32 %v169, 0.35355338
    %179 = vrot.lane.b32.xlu0 %v166, 96
    %v180 = vpop.permute.xlu0 %179
    %181 = vrot.lane.b32.xlu0 %v169, 96
    %v182 = vpop.permute.xlu0 %181
    %vm183 = vcmask 64512
    %v185 = vsel %vm183, %v175, 0
    %v188 = vsel %vm183, %v176, 0
    %v190 = vsel %vm183, %v180, 0
    %v192 = vsel %vm183, %v182, 0
    %194 = vmatpush.xpose.msra.mxu0 0.0
    %195 = vmatpush.xpose.msra.mxu0 0.0
    %196 = vmatpush.xpose.msra.mxu0 0.0
    %197 = vmatpush.xpose.msra.mxu0 0.0
    %198 = vmatpush.xpose.msra.mxu0 0.0
    %199 = vmatpush.xpose.msra.mxu0 0.0
    %200 = vmatpush.xpose.msra.mxu0 0.0
    %201 = vmatpush.xpose.msra.mxu0 0.0
    %202 = vmatpush.xpose.msra.mxu0 0.0
    %203 = vmatpush.xpose.msra.mxu0 0.0
    %204 = vmatpush.xpose.msra.mxu0 0.0
    %205 = vmatpush.xpose.msra.mxu0 0.0
    %206 = vmatpush.xpose.msra.mxu0 0.0
    %207 = vmatpush.xpose.msra.mxu0 0.0
    %208 = vmatpush.xpose.msra.mxu0 %v192
    %209 = vmatpush.xpose.msra.mxu0 %v190
    %210 = vmatmul.f32.gmra.mxu0 %v185
    %v211 = vpop.f32.mrf.mxu0
    %v212 = vadd.f32 %v132, %v211
    %213 = vmatmul.f32.gmra.mxu0 %v188
    %v214 = vpop.f32.mrf.mxu0
    %v215 = vadd.f32 %v133, %v214
    %216 = vdwg.mxu0
    %vm217 = vcmask 130048
    %v218 = vsel %vm217, %v212, -inf
    %219 = vmax.xlane.f32.xlu0 %v218
    %v220 = vpop.xlane.xlu0 %219
    %v221 = vsel %vm217, %v215, -inf
    %222 = vmax.xlane.f32.xlu0 %v221
    %v223 = vpop.xlane.xlu0 %222
    %v224 = vsub.f32 %v212, %v220
    %v225 = vsub.f32 %v215, %v223
    %v226 = vmul.f32 %v224, 1.442695
    %v227 = vpow.pop %v226
    %v228 = vmul.f32 %v225, 1.442695
    %v229 = vpow.pop %v228
    %v230 = vsel %vm217, %v227, 0.0
    %231 = vadd.xlane.f32.xlu0 %v230
    %v232 = vpop.xlane.xlu0 %231
    %v233 = vsel %vm217, %v229, 0.0
    %234 = vadd.xlane.f32.xlu0 %v233
    %v235 = vpop.xlane.xlu0 %234
    %v236 = vrcp.pop %v232
    %v237 = vrcp.pop %v235
    %238 = vrot.lane.b32.xlu0 %v166, 64
    %v239 = vpop.permute.xlu0 %238
    %240 = vrot.lane.b32.xlu0 %v169, 64
    %v241 = vpop.permute.xlu0 %240
    %v245 = vsel %vm217, %v227, 0
    %v248 = vsel %vm217, %v229, 0
    %250 = vmatpush.msra.mxu0 0.0
    %251 = vmatpush.msra.mxu0 0.0
    %252 = vmatpush.msra.mxu0 0.0
    %253 = vmatpush.msra.mxu0 0.0
    %254 = vmatpush.msra.mxu0 0.0
    %255 = vmatpush.msra.mxu0 0.0
    %256 = vmatpush.msra.mxu0 0.0
    %257 = vmatpush.msra.mxu0 0.0
    %258 = vmatpush.msra.mxu0 0.0
    %259 = vmatpush.msra.mxu0 0.0
    %260 = vmatpush.msra.mxu0 0.0
    %261 = vmatpush.msra.mxu0 0.0
    %262 = vmatpush.msra.mxu0 0.0
    %263 = vmatpush.msra.mxu0 0.0
    %264 = vmatpush.msra.mxu0 %v241
    %265 = vmatpush.msra.mxu0 %v239
    %266 = vmatmul.f32.gmra.mxu0 %v245
    %v267 = vpop.f32.mrf.mxu0
    %v268 = vadd.f32 0.0, %v267
    %269 = vmatmul.f32.gmra.mxu0 %v248
    %v270 = vpop.f32.mrf.mxu0
    %v271 = vadd.f32 0.0, %v270
    %272 = vdwg.mxu0
    %v273 = vmul.f32 %v268, %v236
    %v274 = vmul.f32 %v271, %v237
    %275 = vrot.lane.b32.xlu0 %v175, 120
    %v276 = vpop.permute.xlu0 %275
    %277 = vrot.lane.b32.xlu0 %v176, 120
    %v278 = vpop.permute.xlu0 %277
    %279 = vrot.lane.b32.xlu0 %v166, 88
    %v280 = vpop.permute.xlu0 %279
    %281 = vrot.lane.b32.xlu0 %v169, 88
    %v282 = vpop.permute.xlu0 %281
    %v283 = vsel %vm183, %v276, 0
    %v285 = vsel %vm183, %v278, 0
    %v287 = vsel %vm183, %v280, 0
    %v289 = vsel %vm183, %v282, 0
    %291 = vmatpush.xpose.msra.mxu0 0.0
    %292 = vmatpush.xpose.msra.mxu0 0.0
    %293 = vmatpush.xpose.msra.mxu0 0.0
    %294 = vmatpush.xpose.msra.mxu0 0.0
    %295 = vmatpush.xpose.msra.mxu0 0.0
    %296 = vmatpush.xpose.msra.mxu0 0.0
    %297 = vmatpush.xpose.msra.mxu0 0.0
    %298 = vmatpush.xpose.msra.mxu0 0.0
    %299 = vmatpush.xpose.msra.mxu0 0.0
    %300 = vmatpush.xpose.msra.mxu0 0.0
    %301 = vmatpush.xpose.msra.mxu0 0.0
    %302 = vmatpush.xpose.msra.mxu0 0.0
    %303 = vmatpush.xpose.msra.mxu0 0.0
    %304 = vmatpush.xpose.msra.mxu0 0.0
    %305 = vmatpush.xpose.msra.mxu0 %v289
    %306 = vmatpush.xpose.msra.mxu0 %v287
    %307 = vmatmul.f32.gmra.mxu0 %v283
    %v308 = vpop.f32.mrf.mxu0
    %v309 = vadd.f32 %v132, %v308
    %310 = vmatmul.f32.gmra.mxu0 %v285
    %v311 = vpop.f32.mrf.mxu0
    %v312 = vadd.f32 %v133, %v311
    %313 = vdwg.mxu0
    %v314 = vsel %vm217, %v309, -inf
    %315 = vmax.xlane.f32.xlu0 %v314
    %v316 = vpop.xlane.xlu0 %315
    %v317 = vsel %vm217, %v312, -inf
    %318 = vmax.xlane.f32.xlu0 %v317
    %v319 = vpop.xlane.xlu0 %318
    %v320 = vsub.f32 %v309, %v316
    %v321 = vsub.f32 %v312, %v319
    %v322 = vmul.f32 %v320, 1.442695
    %v323 = vpow.pop %v322
    %v324 = vmul.f32 %v321, 1.442695
    %v325 = vpow.pop %v324
    %v326 = vsel %vm217, %v323, 0.0
    %327 = vadd.xlane.f32.xlu0 %v326
    %v328 = vpop.xlane.xlu0 %327
    %v329 = vsel %vm217, %v325, 0.0
    %330 = vadd.xlane.f32.xlu0 %v329
    %v331 = vpop.xlane.xlu0 %330
    %v332 = vrcp.pop %v328
    %v333 = vrcp.pop %v331
    %334 = vrot.lane.b32.xlu0 %v166, 56
    %v335 = vpop.permute.xlu0 %334
    %336 = vrot.lane.b32.xlu0 %v169, 56
    %v337 = vpop.permute.xlu0 %336
    %v341 = vsel %vm217, %v323, 0
    %v344 = vsel %vm217, %v325, 0
    %346 = vmatpush.msra.mxu0 0.0
    %347 = vmatpush.msra.mxu0 0.0
    %348 = vmatpush.msra.mxu0 0.0
    %349 = vmatpush.msra.mxu0 0.0
    %350 = vmatpush.msra.mxu0 0.0
    %351 = vmatpush.msra.mxu0 0.0
    %352 = vmatpush.msra.mxu0 0.0
    %353 = vmatpush.msra.mxu0 0.0
    %354 = vmatpush.msra.mxu0 0.0
    %355 = vmatpush.msra.mxu0 0.0
    %356 = vmatpush.msra.mxu0 0.0
    %357 = vmatpush.msra.mxu0 0.0
    %358 = vmatpush.msra.mxu0 0.0
    %359 = vmatpush.msra.mxu0 0.0
    %360 = vmatpush.msra.mxu0 %v337
    %361 = vmatpush.msra.mxu0 %v335
    %362 = vmatmul.f32.gmra.mxu0 %v341
    %v363 = vpop.f32.mrf.mxu0
    %v364 = vadd.f32 0.0, %v363
    %365 = vmatmul.f32.gmra.mxu0 %v344
    %v366 = vpop.f32.mrf.mxu0
    %v367 = vadd.f32 0.0, %v366
    %368 = vdwg.mxu0
    %v369 = vmul.f32 %v364, %v332
    %v370 = vmul.f32 %v367, %v333
    %v372 = vsel %vm183, %v369, 0
    %v375 = vsel %vm183, %v370, 0
    %377 = vmatpush.msra.mxu0 0.0
    %378 = vmatpush.msra.mxu0 0.0
    %379 = vmatpush.msra.mxu0 0.0
    %380 = vmatpush.msra.mxu0 0.0
    %381 = vmatpush.msra.mxu0 0.0
    %382 = vmatpush.msra.mxu0 0.0
    %383 = vmatpush.msra.mxu0 0.0
    %384 = vmatpush.msra.mxu0 0.0
    %385 = vmatpush.msra.mxu0 0.0
    %386 = vmatpush.msra.mxu0 0.0
    %387 = vmatpush.msra.mxu0 0.0
    %388 = vmatpush.msra.mxu0 0.0
    %389 = vmatpush.msra.mxu0 0.0
    %390 = vmatpush.msra.mxu0 0.0
    %391 = vmatpush.msra.mxu0 0.0
    %392 = vmatpush.msra.mxu0 %v172
    %393 = vmatmul.f32.gmra.mxu0 %v372
    %v394 = vpop.f32.mrf.mxu0
    %v395 = vadd.f32 0.0, %v394
    %396 = vmatmul.f32.gmra.mxu0 %v375
    %v397 = vpop.f32.mrf.mxu0
    %v398 = vadd.f32 0.0, %v397
    %399 = vdwg.mxu0
    %v401 = vsel %vm183, %v273, 0
    %v404 = vsel %vm183, %v274, 0
    %406 = vmatpush.msra.mxu0 0.0
    %407 = vmatpush.msra.mxu0 0.0
    %408 = vmatpush.msra.mxu0 0.0
    %409 = vmatpush.msra.mxu0 0.0
    %410 = vmatpush.msra.mxu0 0.0
    %411 = vmatpush.msra.mxu0 0.0
    %412 = vmatpush.msra.mxu0 0.0
    %413 = vmatpush.msra.mxu0 0.0
    %414 = vmatpush.msra.mxu0 0.0
    %415 = vmatpush.msra.mxu0 0.0
    %416 = vmatpush.msra.mxu0 0.0
    %417 = vmatpush.msra.mxu0 0.0
    %418 = vmatpush.msra.mxu0 0.0
    %419 = vmatpush.msra.mxu0 0.0
    %420 = vmatpush.msra.mxu0 0.0
    %421 = vmatpush.msra.mxu0 %v171
    %422 = vmatmul.f32.gmra.mxu0 %v401
    %v423 = vpop.f32.mrf.mxu0
    %v424 = vadd.f32 %v395, %v423
    %425 = vmatmul.f32.gmra.mxu0 %v404
    %v426 = vpop.f32.mrf.mxu0
    %v427 = vadd.f32 %v398, %v426
    %428 = vdwg.mxu0
    %429 = vrot.lane.b32.xlu0 %v175, 112
    %v430 = vpop.permute.xlu0 %429
    %431 = vrot.lane.b32.xlu0 %v176, 112
    %v432 = vpop.permute.xlu0 %431
    %433 = vrot.lane.b32.xlu0 %v166, 80
    %v434 = vpop.permute.xlu0 %433
    %435 = vrot.lane.b32.xlu0 %v169, 80
    %v436 = vpop.permute.xlu0 %435
    %v437 = vsel %vm183, %v430, 0
    %v439 = vsel %vm183, %v432, 0
    %v441 = vsel %vm183, %v434, 0
    %v443 = vsel %vm183, %v436, 0
    %445 = vmatpush.xpose.msra.mxu0 0.0
    %446 = vmatpush.xpose.msra.mxu0 0.0
    %447 = vmatpush.xpose.msra.mxu0 0.0
    %448 = vmatpush.xpose.msra.mxu0 0.0
    %449 = vmatpush.xpose.msra.mxu0 0.0
    %450 = vmatpush.xpose.msra.mxu0 0.0
    %451 = vmatpush.xpose.msra.mxu0 0.0
    %452 = vmatpush.xpose.msra.mxu0 0.0
    %453 = vmatpush.xpose.msra.mxu0 0.0
    %454 = vmatpush.xpose.msra.mxu0 0.0
    %455 = vmatpush.xpose.msra.mxu0 0.0
    %456 = vmatpush.xpose.msra.mxu0 0.0
    %457 = vmatpush.xpose.msra.mxu0 0.0
    %458 = vmatpush.xpose.msra.mxu0 0.0
    %459 = vmatpush.xpose.msra.mxu0 %v443
    %460 = vmatpush.xpose.msra.mxu0 %v441
    %461 = vmatmul.f32.gmra.mxu0 %v437
    %v462 = vpop.f32.mrf.mxu0
    %v463 = vadd.f32 %v132, %v462
    %464 = vmatmul.f32.gmra.mxu0 %v439
    %v465 = vpop.f32.mrf.mxu0
    %v466 = vadd.f32 %v133, %v465
    %467 = vdwg.mxu0
    %v468 = vsel %vm217, %v463, -inf
    %469 = vmax.xlane.f32.xlu0 %v468
    %v470 = vpop.xlane.xlu0 %469
    %v471 = vsel %vm217, %v466, -inf
    %472 = vmax.xlane.f32.xlu0 %v471
    %v473 = vpop.xlane.xlu0 %472
    %v474 = vsub.f32 %v463, %v470
    %v475 = vsub.f32 %v466, %v473
    %v476 = vmul.f32 %v474, 1.442695
    %v477 = vpow.pop %v476
    %v478 = vmul.f32 %v475, 1.442695
    %v479 = vpow.pop %v478
    %v480 = vsel %vm217, %v477, 0.0
    %481 = vadd.xlane.f32.xlu0 %v480
    %v482 = vpop.xlane.xlu0 %481
    %v483 = vsel %vm217, %v479, 0.0
    %484 = vadd.xlane.f32.xlu0 %v483
    %v485 = vpop.xlane.xlu0 %484
    %v486 = vrcp.pop %v482
    %v487 = vrcp.pop %v485
    %488 = vrot.lane.b32.xlu0 %v166, 48
    %v489 = vpop.permute.xlu0 %488
    %490 = vrot.lane.b32.xlu0 %v169, 48
    %v491 = vpop.permute.xlu0 %490
    %v495 = vsel %vm217, %v477, 0
    %v498 = vsel %vm217, %v479, 0
    %500 = vmatpush.msra.mxu0 0.0
    %501 = vmatpush.msra.mxu0 0.0
    %502 = vmatpush.msra.mxu0 0.0
    %503 = vmatpush.msra.mxu0 0.0
    %504 = vmatpush.msra.mxu0 0.0
    %505 = vmatpush.msra.mxu0 0.0
    %506 = vmatpush.msra.mxu0 0.0
    %507 = vmatpush.msra.mxu0 0.0
    %508 = vmatpush.msra.mxu0 0.0
    %509 = vmatpush.msra.mxu0 0.0
    %510 = vmatpush.msra.mxu0 0.0
    %511 = vmatpush.msra.mxu0 0.0
    %512 = vmatpush.msra.mxu0 0.0
    %513 = vmatpush.msra.mxu0 0.0
    %514 = vmatpush.msra.mxu0 %v491
    %515 = vmatpush.msra.mxu0 %v489
    %516 = vmatmul.f32.gmra.mxu0 %v495
    %v517 = vpop.f32.mrf.mxu0
    %v518 = vadd.f32 0.0, %v517
    %519 = vmatmul.f32.gmra.mxu0 %v498
    %v520 = vpop.f32.mrf.mxu0
    %v521 = vadd.f32 0.0, %v520
    %522 = vdwg.mxu0
    %v523 = vmul.f32 %v518, %v486
    %v524 = vmul.f32 %v521, %v487
    %v526 = vsel %vm183, %v523, 0
    %v529 = vsel %vm183, %v524, 0
    %531 = vmatpush.msra.mxu0 0.0
    %532 = vmatpush.msra.mxu0 0.0
    %533 = vmatpush.msra.mxu0 0.0
    %534 = vmatpush.msra.mxu0 0.0
    %535 = vmatpush.msra.mxu0 0.0
    %536 = vmatpush.msra.mxu0 0.0
    %537 = vmatpush.msra.mxu0 0.0
    %538 = vmatpush.msra.mxu0 0.0
    %539 = vmatpush.msra.mxu0 0.0
    %540 = vmatpush.msra.mxu0 0.0
    %541 = vmatpush.msra.mxu0 0.0
    %542 = vmatpush.msra.mxu0 0.0
    %543 = vmatpush.msra.mxu0 0.0
    %544 = vmatpush.msra.mxu0 0.0
    %545 = vmatpush.msra.mxu0 0.0
    %546 = vmatpush.msra.mxu0 %v173
    %547 = vmatmul.f32.gmra.mxu0 %v526
    %v548 = vpop.f32.mrf.mxu0
    %v549 = vadd.f32 0.0, %v548
    %550 = vmatmul.f32.gmra.mxu0 %v529
    %v551 = vpop.f32.mrf.mxu0
    %v552 = vadd.f32 0.0, %v551
    %553 = vdwg.mxu0
    %v554 = vadd.f32 %v424, %v549
    %v555 = vadd.f32 %v427, %v552
    %556 = vrot.lane.b32.xlu0 %v175, 104
    %v557 = vpop.permute.xlu0 %556
    %558 = vrot.lane.b32.xlu0 %v176, 104
    %v559 = vpop.permute.xlu0 %558
    %560 = vrot.lane.b32.xlu0 %v166, 72
    %v561 = vpop.permute.xlu0 %560
    %562 = vrot.lane.b32.xlu0 %v169, 72
    %v563 = vpop.permute.xlu0 %562
    %v564 = vsel %vm183, %v557, 0
    %v566 = vsel %vm183, %v559, 0
    %v568 = vsel %vm183, %v561, 0
    %v570 = vsel %vm183, %v563, 0
    %572 = vmatpush.xpose.msra.mxu0 0.0
    %573 = vmatpush.xpose.msra.mxu0 0.0
    %574 = vmatpush.xpose.msra.mxu0 0.0
    %575 = vmatpush.xpose.msra.mxu0 0.0
    %576 = vmatpush.xpose.msra.mxu0 0.0
    %577 = vmatpush.xpose.msra.mxu0 0.0
    %578 = vmatpush.xpose.msra.mxu0 0.0
    %579 = vmatpush.xpose.msra.mxu0 0.0
    %580 = vmatpush.xpose.msra.mxu0 0.0
    %581 = vmatpush.xpose.msra.mxu0 0.0
    %582 = vmatpush.xpose.msra.mxu0 0.0
    %583 = vmatpush.xpose.msra.mxu0 0.0
    %584 = vmatpush.xpose.msra.mxu0 0.0
    %585 = vmatpush.xpose.msra.mxu0 0.0
    %586 = vmatpush.xpose.msra.mxu0 %v570
    %587 = vmatpush.xpose.msra.mxu0 %v568
    %588 = vmatmul.f32.gmra.mxu0 %v564
    %v589 = vpop.f32.mrf.mxu0
    %v590 = vadd.f32 %v132, %v589
    %591 = vmatmul.f32.gmra.mxu0 %v566
    %v592 = vpop.f32.mrf.mxu0
    %v593 = vadd.f32 %v133, %v592
    %594 = vdwg.mxu0
    %v595 = vsel %vm217, %v590, -inf
    %596 = vmax.xlane.f32.xlu0 %v595
    %v597 = vpop.xlane.xlu0 %596
    %v598 = vsel %vm217, %v593, -inf
    %599 = vmax.xlane.f32.xlu0 %v598
    %v600 = vpop.xlane.xlu0 %599
    %v601 = vsub.f32 %v590, %v597
    %v602 = vsub.f32 %v593, %v600
    %v603 = vmul.f32 %v601, 1.442695
    %v604 = vpow.pop %v603
    %v605 = vmul.f32 %v602, 1.442695
    %v606 = vpow.pop %v605
    %v607 = vsel %vm217, %v604, 0.0
    %608 = vadd.xlane.f32.xlu0 %v607
    %v609 = vpop.xlane.xlu0 %608
    %v610 = vsel %vm217, %v606, 0.0
    %611 = vadd.xlane.f32.xlu0 %v610
    %v612 = vpop.xlane.xlu0 %611
    %v613 = vrcp.pop %v609
    %v614 = vrcp.pop %v612
    %615 = vrot.lane.b32.xlu0 %v166, 40
    %v616 = vpop.permute.xlu0 %615
    %617 = vrot.lane.b32.xlu0 %v169, 40
    %v618 = vpop.permute.xlu0 %617
    %v622 = vsel %vm217, %v604, 0
    %v625 = vsel %vm217, %v606, 0
    %627 = vmatpush.msra.mxu0 0.0
    %628 = vmatpush.msra.mxu0 0.0
    %629 = vmatpush.msra.mxu0 0.0
    %630 = vmatpush.msra.mxu0 0.0
    %631 = vmatpush.msra.mxu0 0.0
    %632 = vmatpush.msra.mxu0 0.0
    %633 = vmatpush.msra.mxu0 0.0
    %634 = vmatpush.msra.mxu0 0.0
    %635 = vmatpush.msra.mxu0 0.0
    %636 = vmatpush.msra.mxu0 0.0
    %637 = vmatpush.msra.mxu0 0.0
    %638 = vmatpush.msra.mxu0 0.0
    %639 = vmatpush.msra.mxu0 0.0
    %640 = vmatpush.msra.mxu0 0.0
    %641 = vmatpush.msra.mxu0 %v618
    %642 = vmatpush.msra.mxu0 %v616
    %643 = vmatmul.f32.gmra.mxu0 %v622
    %v644 = vpop.f32.mrf.mxu0
    %v645 = vadd.f32 0.0, %v644
    %646 = vmatmul.f32.gmra.mxu0 %v625
    %v647 = vpop.f32.mrf.mxu0
    %v648 = vadd.f32 0.0, %v647
    %649 = vdwg.mxu0
    %v650 = vmul.f32 %v645, %v613
    %v651 = vmul.f32 %v648, %v614
    %v653 = vsel %vm183, %v650, 0
    %v656 = vsel %vm183, %v651, 0
    %658 = vmatpush.msra.mxu0 0.0
    %659 = vmatpush.msra.mxu0 0.0
    %660 = vmatpush.msra.mxu0 0.0
    %661 = vmatpush.msra.mxu0 0.0
    %662 = vmatpush.msra.mxu0 0.0
    %663 = vmatpush.msra.mxu0 0.0
    %664 = vmatpush.msra.mxu0 0.0
    %665 = vmatpush.msra.mxu0 0.0
    %666 = vmatpush.msra.mxu0 0.0
    %667 = vmatpush.msra.mxu0 0.0
    %668 = vmatpush.msra.mxu0 0.0
    %669 = vmatpush.msra.mxu0 0.0
    %670 = vmatpush.msra.mxu0 0.0
    %671 = vmatpush.msra.mxu0 0.0
    %672 = vmatpush.msra.mxu0 0.0
    %673 = vmatpush.msra.mxu0 %v174
    %674 = vmatmul.f32.gmra.mxu0 %v653
    %v675 = vpop.f32.mrf.mxu0
    %v676 = vadd.f32 0.0, %v675
    %677 = vmatmul.f32.gmra.mxu0 %v656
    %v678 = vpop.f32.mrf.mxu0
    %v679 = vadd.f32 0.0, %v678
    %680 = vdwg.mxu0
    %v681 = vadd.f32 %v554, %v676
    %v682 = vadd.f32 %v555, %v679
    %v683 = vld [vmem:[%s7] sm:$0x1]
    %v685 = vperm.slane %v683, 0
    %v687 = vadd.f32 %v681, %v685
    %v688 = vadd.f32 %v682, %v685
    %v689 = vadd.f32 %v687, %v130
    %v690 = vadd.f32 %v688, %v131
    %v691 = vld [vmem:[%s8] sm:$0x1]
    %v692 = vld [vmem:[%s9] sm:$0x1]
    %v693 = vsel %vm70, %v689, 0.0
    %694 = vadd.xlane.f32.xlu0 %v693
    %v695 = vpop.xlane.xlu0 %694
    %v696 = vsel %vm70, %v690, 0.0
    %697 = vadd.xlane.f32.xlu0 %v696
    %v698 = vpop.xlane.xlu0 %697
    %v699 = vmul.f32 %v695, %v83
    %v700 = vmul.f32 %v698, %v83
    %v701 = vsub.f32 %v689, %v699
    %v702 = vsub.f32 %v690, %v700
    %v703 = vmul.f32 %v701, %v701
    %v704 = vmul.f32 %v702, %v702
    %v705 = vsel %vm70, %v703, 0.0
    %706 = vadd.xlane.f32.xlu0 %v705
    %v707 = vpop.xlane.xlu0 %706
    %v708 = vsel %vm70, %v704, 0.0
    %709 = vadd.xlane.f32.xlu0 %v708
    %v710 = vpop.xlane.xlu0 %709
    %v711 = vmul.f32 %v707, %v83
    %v712 = vmul.f32 %v710, %v83
    %v713 = vadd.f32 %v711, 1e-12
    %v714 = vadd.f32 %v712, 1e-12
    %v715 = vrsqrt.pop %v713
    %v716 = vmul.f32 %v715, %v713
    %v717 = vmul.f32 %v716, %v715
    %v718 = vmul.f32 0.5, %v717
    %v719 = vsub.f32 1.5, %v718
    %v720 = vmul.f32 %v715, %v719
    %vm721 = vweird.f32 %v713
    %vm722 = vweird.f32 %v715
    %vm723 = vmor %vm721, %vm722
    %v724 = vsel %vm723, %v715, %v720
    %v725 = vrsqrt.pop %v714
    %v726 = vmul.f32 %v725, %v714
    %v727 = vmul.f32 %v726, %v725
    %v728 = vmul.f32 0.5, %v727
    %v729 = vsub.f32 1.5, %v728
    %v730 = vmul.f32 %v725, %v729
    %vm731 = vweird.f32 %v714
    %vm732 = vweird.f32 %v725
    %vm733 = vmor %vm731, %vm732
    %v734 = vsel %vm733, %v725, %v730
    %v735 = vmul.f32 %v701, %v724
    %v736 = vmul.f32 %v702, %v734
    %v738 = vperm.slane %v691, 0
    %v740 = vmul.f32 %v735, %v738
    %v741 = vmul.f32 %v736, %v738
    %v743 = vperm.slane %v692, 0
    %v745 = vadd.f32 %v740, %v743
    %v746 = vadd.f32 %v741, %v743
    %v747 = vld [vmem:[%s10] sm:$0xff]
    %v748 = vld [vmem:[%s10 + $0x8] sm:$0xff]
    %v749 = vld [vmem:[%s10 + $0x10] sm:$0xff]
    %v750 = vld [vmem:[%s10 + $0x18] sm:$0xff]
    %v751 = vld [vmem:[%s11] sm:$0x1]
    %v753 = vperm.slane %v751, 0
    %v756 = vsel %vm70, %v745, 0
    %v759 = vsel %vm70, %v746, 0
    %761 = vmatpush.msra.mxu0 0.0
    %762 = vmatpush.msra.mxu0 0.0
    %763 = vmatpush.msra.mxu0 0.0
    %764 = vmatpush.msra.mxu0 0.0
    %765 = vmatpush.msra.mxu0 0.0
    %766 = vmatpush.msra.mxu0 0.0
    %767 = vmatpush.msra.mxu0 0.0
    %768 = vmatpush.msra.mxu0 0.0
    %769 = vmatpush.msra.mxu0 0.0
    %770 = vmatpush.msra.mxu0 0.0
    %771 = vmatpush.msra.mxu0 0.0
    %772 = vmatpush.msra.mxu0 0.0
    %773 = vmatpush.msra.mxu0 %v750
    %774 = vmatpush.msra.mxu0 %v749
    %775 = vmatpush.msra.mxu0 %v748
    %776 = vmatpush.msra.mxu0 %v747
    %777 = vmatmul.f32.gmra.mxu0 %v756
    %v778 = vpop.f32.mrf.mxu0
    %v779 = vadd.f32 %v753, %v778
    %780 = vmatmul.f32.gmra.mxu0 %v759
    %v781 = vpop.f32.mrf.mxu0
    %v782 = vadd.f32 %v753, %v781
    %783 = vdwg.mxu0
    %v784 = vmul.f32 %v779, 0.5
    %v785 = vmul.f32 %v782, 0.5
    %v786 = vmul.f32 %v779, 0.044715
    %v787 = vmul.f32 %v782, 0.044715
    %v788 = vmul.f32 %v786, %v779
    %v789 = vmul.f32 %v787, %v782
    %v790 = vmul.f32 %v788, %v779
    %v791 = vmul.f32 %v789, %v782
    %v792 = vadd.f32 %v779, %v790
    %v793 = vadd.f32 %v782, %v791
    %v794 = vmul.f32 %v792, 0.7978846
    %v795 = vmul.f32 %v793, 0.7978846
    %v796 = vtanh.pop %v794
    %v797 = vtanh.pop %v795
    %v798 = vadd.f32 %v796, 1.0
    %v799 = vadd.f32 %v797, 1.0
    %v800 = vmul.f32 %v784, %v798
    %v801 = vmul.f32 %v785, %v799
    %v802 = vld [vmem:[%s12] sm:$0xff]
    %v803 = vld [vmem:[%s12 + $0x8] sm:$0xff]
    %v804 = vld [vmem:[%s12 + $0x10] sm:$0xff]
    %v805 = vld [vmem:[%s12 + $0x18] sm:$0xff]
    %v806 = vld [vmem:[%s12 + $0x20] sm:$0xff]
    %v807 = vld [vmem:[%s12 + $0x28] sm:$0xff]
    %v808 = vld [vmem:[%s12 + $0x30] sm:$0xff]
    %v809 = vld [vmem:[%s12 + $0x38] sm:$0xff]
    %v810 = vld [vmem:[%s13] sm:$0x1]
    %v812 = vperm.slane %v810, 0
    %vm814 = vcmask 523264
    %v816 = vsel %vm814, %v800, 0
    %v819 = vsel %vm814, %v801, 0
    %821 = vmatpush.msra.mxu0 0.0
    %822 = vmatpush.msra.mxu0 0.0
    %823 = vmatpush.msra.mxu0 0.0
    %824 = vmatpush.msra.mxu0 0.0
    %825 = vmatpush.msra.mxu0 0.0
    %826 = vmatpush.msra.mxu0 0.0
    %827 = vmatpush.msra.mxu0 0.0
    %828 = vmatpush.msra.mxu0 0.0
    %829 = vmatpush.msra.mxu0 %v809
    %830 = vmatpush.msra.mxu0 %v808
    %831 = vmatpush.msra.mxu0 %v807
    %832 = vmatpush.msra.mxu0 %v806
    %833 = vmatpush.msra.mxu0 %v805
    %834 = vmatpush.msra.mxu0 %v804
    %835 = vmatpush.msra.mxu0 %v803
    %836 = vmatpush.msra.mxu0 %v802
    %837 = vmatmul.f32.gmra.mxu0 %v816
    %v838 = vpop.f32.mrf.mxu0
    %v839 = vadd.f32 %v812, %v838
    %840 = vmatmul.f32.gmra.mxu0 %v819
    %v841 = vpop.f32.mrf.mxu0
    %v842 = vadd.f32 %v812, %v841
    %843 = vdwg.mxu0
    %v844 = vadd.f32 %v839, %v745
    %v845 = vadd.f32 %v842, %v746
    %v846 = vld [vmem:[%s14] sm:$0x1]
    %v847 = vld [vmem:[%s15] sm:$0x1]
    %v848 = vsel %vm70, %v844, 0.0
    %849 = vadd.xlane.f32.xlu0 %v848
    %v850 = vpop.xlane.xlu0 %849
    %v851 = vsel %vm70, %v845, 0.0
    %852 = vadd.xlane.f32.xlu0 %v851
    %v853 = vpop.xlane.xlu0 %852
    %v854 = vmul.f32 %v850, %v83
    %v855 = vmul.f32 %v853, %v83
    %v856 = vsub.f32 %v844, %v854
    %v857 = vsub.f32 %v845, %v855
    %v858 = vmul.f32 %v856, %v856
    %v859 = vmul.f32 %v857, %v857
    %v860 = vsel %vm70, %v858, 0.0
    %861 = vadd.xlane.f32.xlu0 %v860
    %v862 = vpop.xlane.xlu0 %861
    %v863 = vsel %vm70, %v859, 0.0
    %864 = vadd.xlane.f32.xlu0 %v863
    %v865 = vpop.xlane.xlu0 %864
    %v866 = vmul.f32 %v862, %v83
    %v867 = vmul.f32 %v865, %v83
    %v868 = vadd.f32 %v866, 1e-12
    %v869 = vadd.f32 %v867, 1e-12
    %v870 = vrsqrt.pop %v868
    %v871 = vmul.f32 %v870, %v868
    %v872 = vmul.f32 %v871, %v870
    %v873 = vmul.f32 0.5, %v872
    %v874 = vsub.f32 1.5, %v873
    %v875 = vmul.f32 %v870, %v874
    %vm876 = vweird.f32 %v868
    %vm877 = vweird.f32 %v870
    %vm878 = vmor %vm876, %vm877
    %v879 = vsel %vm878, %v870, %v875
    %v880 = vrsqrt.pop %v869
    %v881 = vmul.f32 %v880, %v869
    %v882 = vmul.f32 %v881, %v880
    %v883 = vmul.f32 0.5, %v882
    %v884 = vsub.f32 1.5, %v883
    %v885 = vmul.f32 %v880, %v884
    %vm886 = vweird.f32 %v869
    %vm887 = vweird.f32 %v880
    %vm888 = vmor %vm886, %vm887
    %v889 = vsel %vm888, %v880, %v885
    %v890 = vmul.f32 %v856, %v879
    %v891 = vmul.f32 %v857, %v889
    %v893 = vperm.slane %v846, 0
    %v895 = vmul.f32 %v890, %v893
    %v896 = vmul.f32 %v891, %v893
    %v898 = vperm.slane %v847, 0
    %v900 = vadd.f32 %v895, %v898
    %v901 = vadd.f32 %v896, %v898
    %s902 = scalar_lea.vmem %s4, 32
    %v903 = vld [vmem:[%s902] sm:$0xff]
    %v904 = vld [vmem:[%s902 + $0x8] sm:$0xff]
    %v905 = vld [vmem:[%s902 + $0x10] sm:$0xff]
    %v906 = vld [vmem:[%s902 + $0x18] sm:$0xff]
    %s907 = scalar_lea.vmem %s5, 1
    %v908 = vld [vmem:[%s907] sm:$0x1]
    %v910 = vperm.slane %v908, 0
    %v913 = vsel %vm70, %v900, 0
    %v916 = vsel %vm70, %v901, 0
    %918 = vmatpush.msra.mxu0 0.0
    %919 = vmatpush.msra.mxu0 0.0
    %920 = vmatpush.msra.mxu0 0.0
    %921 = vmatpush.msra.mxu0 0.0
    %922 = vmatpush.msra.mxu0 0.0
    %923 = vmatpush.msra.mxu0 0.0
    %924 = vmatpush.msra.mxu0 0.0
    %925 = vmatpush.msra.mxu0 0.0
    %926 = vmatpush.msra.mxu0 0.0
    %927 = vmatpush.msra.mxu0 0.0
    %928 = vmatpush.msra.mxu0 0.0
    %929 = vmatpush.msra.mxu0 0.0
    %930 = vmatpush.msra.mxu0 %v906
    %931 = vmatpush.msra.mxu0 %v905
    %932 = vmatpush.msra.mxu0 %v904
    %933 = vmatpush.msra.mxu0 %v903
    %934 = vmatmul.f32.gmra.mxu0 %v913
    %v935 = vpop.f32.mrf.mxu0
    %v936 = vadd.f32 %v910, %v935
    %937 = vmatmul.f32.gmra.mxu0 %v916
    %v938 = vpop.f32.mrf.mxu0
    %v939 = vadd.f32 %v910, %v938
    %940 = vdwg.mxu0
    %s941 = scalar_lea.vmem %s6, 32
    %v942 = vld [vmem:[%s941] sm:$0xff]
    %v943 = vld [vmem:[%s941 + $0x8] sm:$0xff]
    %v944 = vld [vmem:[%s941 + $0x10] sm:$0xff]
    %v945 = vld [vmem:[%s941 + $0x18] sm:$0xff]
    %v946 = vmul.f32 %v936, 0.35355338
    %v947 = vmul.f32 %v939, 0.35355338
    %950 = vrot.lane.b32.xlu0 %v936, 96
    %v951 = vpop.permute.xlu0 %950
    %952 = vrot.lane.b32.xlu0 %v939, 96
    %v953 = vpop.permute.xlu0 %952
    %v955 = vsel %vm183, %v946, 0
    %v958 = vsel %vm183, %v947, 0
    %v960 = vsel %vm183, %v951, 0
    %v962 = vsel %vm183, %v953, 0
    %964 = vmatpush.xpose.msra.mxu0 0.0
    %965 = vmatpush.xpose.msra.mxu0 0.0
    %966 = vmatpush.xpose.msra.mxu0 0.0
    %967 = vmatpush.xpose.msra.mxu0 0.0
    %968 = vmatpush.xpose.msra.mxu0 0.0
    %969 = vmatpush.xpose.msra.mxu0 0.0
    %970 = vmatpush.xpose.msra.mxu0 0.0
    %971 = vmatpush.xpose.msra.mxu0 0.0
    %972 = vmatpush.xpose.msra.mxu0 0.0
    %973 = vmatpush.xpose.msra.mxu0 0.0
    %974 = vmatpush.xpose.msra.mxu0 0.0
    %975 = vmatpush.xpose.msra.mxu0 0.0
    %976 = vmatpush.xpose.msra.mxu0 0.0
    %977 = vmatpush.xpose.msra.mxu0 0.0
    %978 = vmatpush.xpose.msra.mxu0 %v962
    %979 = vmatpush.xpose.msra.mxu0 %v960
    %980 = vmatmul.f32.gmra.mxu0 %v955
    %v981 = vpop.f32.mrf.mxu0
    %v982 = vadd.f32 %v132, %v981
    %983 = vmatmul.f32.gmra.mxu0 %v958
    %v984 = vpop.f32.mrf.mxu0
    %v985 = vadd.f32 %v133, %v984
    %986 = vdwg.mxu0
    %v987 = vsel %vm217, %v982, -inf
    %988 = vmax.xlane.f32.xlu0 %v987
    %v989 = vpop.xlane.xlu0 %988
    %v990 = vsel %vm217, %v985, -inf
    %991 = vmax.xlane.f32.xlu0 %v990
    %v992 = vpop.xlane.xlu0 %991
    %v993 = vsub.f32 %v982, %v989
    %v994 = vsub.f32 %v985, %v992
    %v995 = vmul.f32 %v993, 1.442695
    %v996 = vpow.pop %v995
    %v997 = vmul.f32 %v994, 1.442695
    %v998 = vpow.pop %v997
    %v999 = vsel %vm217, %v996, 0.0
    %1000 = vadd.xlane.f32.xlu0 %v999
    %v1001 = vpop.xlane.xlu0 %1000
    %v1002 = vsel %vm217, %v998, 0.0
    %1003 = vadd.xlane.f32.xlu0 %v1002
    %v1004 = vpop.xlane.xlu0 %1003
    %v1005 = vrcp.pop %v1001
    %v1006 = vrcp.pop %v1004
    %1007 = vrot.lane.b32.xlu0 %v936, 64
    %v1008 = vpop.permute.xlu0 %1007
    %1009 = vrot.lane.b32.xlu0 %v939, 64
    %v1010 = vpop.permute.xlu0 %1009
    %v1014 = vsel %vm217, %v996, 0
    %v1017 = vsel %vm217, %v998, 0
    %1019 = vmatpush.msra.mxu0 0.0
    %1020 = vmatpush.msra.mxu0 0.0
    %1021 = vmatpush.msra.mxu0 0.0
    %1022 = vmatpush.msra.mxu0 0.0
    %1023 = vmatpush.msra.mxu0 0.0
    %1024 = vmatpush.msra.mxu0 0.0
    %1025 = vmatpush.msra.mxu0 0.0
    %1026 = vmatpush.msra.mxu0 0.0
    %1027 = vmatpush.msra.mxu0 0.0
    %1028 = vmatpush.msra.mxu0 0.0
    %1029 = vmatpush.msra.mxu0 0.0
    %1030 = vmatpush.msra.mxu0 0.0
    %1031 = vmatpush.msra.mxu0 0.0
    %1032 = vmatpush.msra.mxu0 0.0
    %1033 = vmatpush.msra.mxu0 %v1010
    %1034 = vmatpush.msra.mxu0 %v1008
    %1035 = vmatmul.f32.gmra.mxu0 %v1014
    %v1036 = vpop.f32.mrf.mxu0
    %v1037 = vadd.f32 0.0, %v1036
    %1038 = vmatmul.f32.gmra.mxu0 %v1017
    %v1039 = vpop.f32.mrf.mxu0
    %v1040 = vadd.f32 0.0, %v1039
    %1041 = vdwg.mxu0
    %v1042 = vmul.f32 %v1037, %v1005
    %v1043 = vmul.f32 %v1040, %v1006
    %1044 = vrot.lane.b32.xlu0 %v946, 120
    %v1045 = vpop.permute.xlu0 %1044
    %1046 = vrot.lane.b32.xlu0 %v947, 120
    %v1047 = vpop.permute.xlu0 %1046
    %1048 = vrot.lane.b32.xlu0 %v936, 88
    %v1049 = vpop.permute.xlu0 %1048
    %1050 = vrot.lane.b32.xlu0 %v939, 88
    %v1051 = vpop.permute.xlu0 %1050
    %v1052 = vsel %vm183, %v1045, 0
    %v1054 = vsel %vm183, %v1047, 0
    %v1056 = vsel %vm183, %v1049, 0
    %v1058 = vsel %vm183, %v1051, 0
    %1060 = vmatpush.xpose.msra.mxu0 0.0
    %1061 = vmatpush.xpose.msra.mxu0 0.0
    %1062 = vmatpush.xpose.msra.mxu0 0.0
    %1063 = vmatpush.xpose.msra.mxu0 0.0
    %1064 = vmatpush.xpose.msra.mxu0 0.0
    %1065 = vmatpush.xpose.msra.mxu0 0.0
    %1066 = vmatpush.xpose.msra.mxu0 0.0
    %1067 = vmatpush.xpose.msra.mxu0 0.0
    %1068 = vmatpush.xpose.msra.mxu0 0.0
    %1069 = vmatpush.xpose.msra.mxu0 0.0
    %1070 = vmatpush.xpose.msra.mxu0 0.0
    %1071 = vmatpush.xpose.msra.mxu0 0.0
    %1072 = vmatpush.xpose.msra.mxu0 0.0
    %1073 = vmatpush.xpose.msra.mxu0 0.0
    %1074 = vmatpush.xpose.msra.mxu0 %v1058
    %1075 = vmatpush.xpose.msra.mxu0 %v1056
    %1076 = vmatmul.f32.gmra.mxu0 %v1052
    %v1077 = vpop.f32.mrf.mxu0
    %v1078 = vadd.f32 %v132, %v1077
    %1079 = vmatmul.f32.gmra.mxu0 %v1054
    %v1080 = vpop.f32.mrf.mxu0
    %v1081 = vadd.f32 %v133, %v1080
    %1082 = vdwg.mxu0
    %v1083 = vsel %vm217, %v1078, -inf
    %1084 = vmax.xlane.f32.xlu0 %v1083
    %v1085 = vpop.xlane.xlu0 %1084
    %v1086 = vsel %vm217, %v1081, -inf
    %1087 = vmax.xlane.f32.xlu0 %v1086
    %v1088 = vpop.xlane.xlu0 %1087
    %v1089 = vsub.f32 %v1078, %v1085
    %v1090 = vsub.f32 %v1081, %v1088
    %v1091 = vmul.f32 %v1089, 1.442695
    %v1092 = vpow.pop %v1091
    %v1093 = vmul.f32 %v1090, 1.442695
    %v1094 = vpow.pop %v1093
    %v1095 = vsel %vm217, %v1092, 0.0
    %1096 = vadd.xlane.f32.xlu0 %v1095
    %v1097 = vpop.xlane.xlu0 %1096
    %v1098 = vsel %vm217, %v1094, 0.0
    %1099 = vadd.xlane.f32.xlu0 %v1098
    %v1100 = vpop.xlane.xlu0 %1099
    %v1101 = vrcp.pop %v1097
    %v1102 = vrcp.pop %v1100
    %1103 = vrot.lane.b32.xlu0 %v936, 56
    %v1104 = vpop.permute.xlu0 %1103
    %1105 = vrot.lane.b32.xlu0 %v939, 56
    %v1106 = vpop.permute.xlu0 %1105
    %v1110 = vsel %vm217, %v1092, 0
    %v1113 = vsel %vm217, %v1094, 0
    %1115 = vmatpush.msra.mxu0 0.0
    %1116 = vmatpush.msra.mxu0 0.0
    %1117 = vmatpush.msra.mxu0 0.0
    %1118 = vmatpush.msra.mxu0 0.0
    %1119 = vmatpush.msra.mxu0 0.0
    %1120 = vmatpush.msra.mxu0 0.0
    %1121 = vmatpush.msra.mxu0 0.0
    %1122 = vmatpush.msra.mxu0 0.0
    %1123 = vmatpush.msra.mxu0 0.0
    %1124 = vmatpush.msra.mxu0 0.0
    %1125 = vmatpush.msra.mxu0 0.0
    %1126 = vmatpush.msra.mxu0 0.0
    %1127 = vmatpush.msra.mxu0 0.0
    %1128 = vmatpush.msra.mxu0 0.0
    %1129 = vmatpush.msra.mxu0 %v1106
    %1130 = vmatpush.msra.mxu0 %v1104
    %1131 = vmatmul.f32.gmra.mxu0 %v1110
    %v1132 = vpop.f32.mrf.mxu0
    %v1133 = vadd.f32 0.0, %v1132
    %1134 = vmatmul.f32.gmra.mxu0 %v1113
    %v1135 = vpop.f32.mrf.mxu0
    %v1136 = vadd.f32 0.0, %v1135
    %1137 = vdwg.mxu0
    %v1138 = vmul.f32 %v1133, %v1101
    %v1139 = vmul.f32 %v1136, %v1102
    %v1141 = vsel %vm183, %v1138, 0
    %v1144 = vsel %vm183, %v1139, 0
    %1146 = vmatpush.msra.mxu0 0.0
    %1147 = vmatpush.msra.mxu0 0.0
    %1148 = vmatpush.msra.mxu0 0.0
    %1149 = vmatpush.msra.mxu0 0.0
    %1150 = vmatpush.msra.mxu0 0.0
    %1151 = vmatpush.msra.mxu0 0.0
    %1152 = vmatpush.msra.mxu0 0.0
    %1153 = vmatpush.msra.mxu0 0.0
    %1154 = vmatpush.msra.mxu0 0.0
    %1155 = vmatpush.msra.mxu0 0.0
    %1156 = vmatpush.msra.mxu0 0.0
    %1157 = vmatpush.msra.mxu0 0.0
    %1158 = vmatpush.msra.mxu0 0.0
    %1159 = vmatpush.msra.mxu0 0.0
    %1160 = vmatpush.msra.mxu0 0.0
    %1161 = vmatpush.msra.mxu0 %v943
    %1162 = vmatmul.f32.gmra.mxu0 %v1141
    %v1163 = vpop.f32.mrf.mxu0
    %v1164 = vadd.f32 0.0, %v1163
    %1165 = vmatmul.f32.gmra.mxu0 %v1144
    %v1166 = vpop.f32.mrf.mxu0
    %v1167 = vadd.f32 0.0, %v1166
    %1168 = vdwg.mxu0
    %v1170 = vsel %vm183, %v1042, 0
    %v1173 = vsel %vm183, %v1043, 0
    %1175 = vmatpush.msra.mxu0 0.0
    %1176 = vmatpush.msra.mxu0 0.0
    %1177 = vmatpush.msra.mxu0 0.0
    %1178 = vmatpush.msra.mxu0 0.0
    %1179 = vmatpush.msra.mxu0 0.0
    %1180 = vmatpush.msra.mxu0 0.0
    %1181 = vmatpush.msra.mxu0 0.0
    %1182 = vmatpush.msra.mxu0 0.0
    %1183 = vmatpush.msra.mxu0 0.0
    %1184 = vmatpush.msra.mxu0 0.0
    %1185 = vmatpush.msra.mxu0 0.0
    %1186 = vmatpush.msra.mxu0 0.0
    %1187 = vmatpush.msra.mxu0 0.0
    %1188 = vmatpush.msra.mxu0 0.0
    %1189 = vmatpush.msra.mxu0 0.0
    %1190 = vmatpush.msra.mxu0 %v942
    %1191 = vmatmul.f32.gmra.mxu0 %v1170
    %v1192 = vpop.f32.mrf.mxu0
    %v1193 = vadd.f32 %v1164, %v1192
    %1194 = vmatmul.f32.gmra.mxu0 %v1173
    %v1195 = vpop.f32.mrf.mxu0
    %v1196 = vadd.f32 %v1167, %v1195
    %1197 = vdwg.mxu0
    %1198 = vrot.lane.b32.xlu0 %v946, 112
    %v1199 = vpop.permute.xlu0 %1198
    %1200 = vrot.lane.b32.xlu0 %v947, 112
    %v1201 = vpop.permute.xlu0 %1200
    %1202 = vrot.lane.b32.xlu0 %v936, 80
    %v1203 = vpop.permute.xlu0 %1202
    %1204 = vrot.lane.b32.xlu0 %v939, 80
    %v1205 = vpop.permute.xlu0 %1204
    %v1206 = vsel %vm183, %v1199, 0
    %v1208 = vsel %vm183, %v1201, 0
    %v1210 = vsel %vm183, %v1203, 0
    %v1212 = vsel %vm183, %v1205, 0
    %1214 = vmatpush.xpose.msra.mxu0 0.0
    %1215 = vmatpush.xpose.msra.mxu0 0.0
    %1216 = vmatpush.xpose.msra.mxu0 0.0
    %1217 = vmatpush.xpose.msra.mxu0 0.0
    %1218 = vmatpush.xpose.msra.mxu0 0.0
    %1219 = vmatpush.xpose.msra.mxu0 0.0
    %1220 = vmatpush.xpose.msra.mxu0 0.0
    %1221 = vmatpush.xpose.msra.mxu0 0.0
    %1222 = vmatpush.xpose.msra.mxu0 0.0
    %1223 = vmatpush.xpose.msra.mxu0 0.0
    %1224 = vmatpush.xpose.msra.mxu0 0.0
    %1225 = vmatpush.xpose.msra.mxu0 0.0
    %1226 = vmatpush.xpose.msra.mxu0 0.0
    %1227 = vmatpush.xpose.msra.mxu0 0.0
    %1228 = vmatpush.xpose.msra.mxu0 %v1212
    %1229 = vmatpush.xpose.msra.mxu0 %v1210
    %1230 = vmatmul.f32.gmra.mxu0 %v1206
    %v1231 = vpop.f32.mrf.mxu0
    %v1232 = vadd.f32 %v132, %v1231
    %1233 = vmatmul.f32.gmra.mxu0 %v1208
    %v1234 = vpop.f32.mrf.mxu0
    %v1235 = vadd.f32 %v133, %v1234
    %1236 = vdwg.mxu0
    %v1237 = vsel %vm217, %v1232, -inf
    %1238 = vmax.xlane.f32.xlu0 %v1237
    %v1239 = vpop.xlane.xlu0 %1238
    %v1240 = vsel %vm217, %v1235, -inf
    %1241 = vmax.xlane.f32.xlu0 %v1240
    %v1242 = vpop.xlane.xlu0 %1241
    %v1243 = vsub.f32 %v1232, %v1239
    %v1244 = vsub.f32 %v1235, %v1242
    %v1245 = vmul.f32 %v1243, 1.442695
    %v1246 = vpow.pop %v1245
    %v1247 = vmul.f32 %v1244, 1.442695
    %v1248 = vpow.pop %v1247
    %v1249 = vsel %vm217, %v1246, 0.0
    %1250 = vadd.xlane.f32.xlu0 %v1249
    %v1251 = vpop.xlane.xlu0 %1250
    %v1252 = vsel %vm217, %v1248, 0.0
    %1253 = vadd.xlane.f32.xlu0 %v1252
    %v1254 = vpop.xlane.xlu0 %1253
    %v1255 = vrcp.pop %v1251
    %v1256 = vrcp.pop %v1254
    %1257 = vrot.lane.b32.xlu0 %v936, 48
    %v1258 = vpop.permute.xlu0 %1257
    %1259 = vrot.lane.b32.xlu0 %v939, 48
    %v1260 = vpop.permute.xlu0 %1259
    %v1264 = vsel %vm217, %v1246, 0
    %v1267 = vsel %vm217, %v1248, 0
    %1269 = vmatpush.msra.mxu0 0.0
    %1270 = vmatpush.msra.mxu0 0.0
    %1271 = vmatpush.msra.mxu0 0.0
    %1272 = vmatpush.msra.mxu0 0.0
    %1273 = vmatpush.msra.mxu0 0.0
    %1274 = vmatpush.msra.mxu0 0.0
    %1275 = vmatpush.msra.mxu0 0.0
    %1276 = vmatpush.msra.mxu0 0.0
    %1277 = vmatpush.msra.mxu0 0.0
    %1278 = vmatpush.msra.mxu0 0.0
    %1279 = vmatpush.msra.mxu0 0.0
    %1280 = vmatpush.msra.mxu0 0.0
    %1281 = vmatpush.msra.mxu0 0.0
    %1282 = vmatpush.msra.mxu0 0.0
    %1283 = vmatpush.msra.mxu0 %v1260
    %1284 = vmatpush.msra.mxu0 %v1258
    %1285 = vmatmul.f32.gmra.mxu0 %v1264
    %v1286 = vpop.f32.mrf.mxu0
    %v1287 = vadd.f32 0.0, %v1286
    %1288 = vmatmul.f32.gmra.mxu0 %v1267
    %v1289 = vpop.f32.mrf.mxu0
    %v1290 = vadd.f32 0.0, %v1289
    %1291 = vdwg.mxu0
    %v1292 = vmul.f32 %v1287, %v1255
    %v1293 = vmul.f32 %v1290, %v1256
    %v1295 = vsel %vm183, %v1292, 0
    %v1298 = vsel %vm183, %v1293, 0
    %1300 = vmatpush.msra.mxu0 0.0
    %1301 = vmatpush.msra.mxu0 0.0
    %1302 = vmatpush.msra.mxu0 0.0
    %1303 = vmatpush.msra.mxu0 0.0
    %1304 = vmatpush.msra.mxu0 0.0
    %1305 = vmatpush.msra.mxu0 0.0
    %1306 = vmatpush.msra.mxu0 0.0
    %1307 = vmatpush.msra.mxu0 0.0
    %1308 = vmatpush.msra.mxu0 0.0
    %1309 = vmatpush.msra.mxu0 0.0
    %1310 = vmatpush.msra.mxu0 0.0
    %1311 = vmatpush.msra.mxu0 0.0
    %1312 = vmatpush.msra.mxu0 0.0
    %1313 = vmatpush.msra.mxu0 0.0
    %1314 = vmatpush.msra.mxu0 0.0
    %1315 = vmatpush.msra.mxu0 %v944
    %1316 = vmatmul.f32.gmra.mxu0 %v1295
    %v1317 = vpop.f32.mrf.mxu0
    %v1318 = vadd.f32 0.0, %v1317
    %1319 = vmatmul.f32.gmra.mxu0 %v1298
    %v1320 = vpop.f32.mrf.mxu0
    %v1321 = vadd.f32 0.0, %v1320
    %1322 = vdwg.mxu0
    %v1323 = vadd.f32 %v1193, %v1318
    %v1324 = vadd.f32 %v1196, %v1321
    %1325 = vrot.lane.b32.xlu0 %v946, 104
    %v1326 = vpop.permute.xlu0 %1325
    %1327 = vrot.lane.b32.xlu0 %v947, 104
    %v1328 = vpop.permute.xlu0 %1327
    %1329 = vrot.lane.b32.xlu0 %v936, 72
    %v1330 = vpop.permute.xlu0 %1329
    %1331 = vrot.lane.b32.xlu0 %v939, 72
    %v1332 = vpop.permute.xlu0 %1331
    %v1333 = vsel %vm183, %v1326, 0
    %v1335 = vsel %vm183, %v1328, 0
    %v1337 = vsel %vm183, %v1330, 0
    %v1339 = vsel %vm183, %v1332, 0
    %1341 = vmatpush.xpose.msra.mxu0 0.0
    %1342 = vmatpush.xpose.msra.mxu0 0.0
    %1343 = vmatpush.xpose.msra.mxu0 0.0
    %1344 = vmatpush.xpose.msra.mxu0 0.0
    %1345 = vmatpush.xpose.msra.mxu0 0.0
    %1346 = vmatpush.xpose.msra.mxu0 0.0
    %1347 = vmatpush.xpose.msra.mxu0 0.0
    %1348 = vmatpush.xpose.msra.mxu0 0.0
    %1349 = vmatpush.xpose.msra.mxu0 0.0
    %1350 = vmatpush.xpose.msra.mxu0 0.0
    %1351 = vmatpush.xpose.msra.mxu0 0.0
    %1352 = vmatpush.xpose.msra.mxu0 0.0
    %1353 = vmatpush.xpose.msra.mxu0 0.0
    %1354 = vmatpush.xpose.msra.mxu0 0.0
    %1355 = vmatpush.xpose.msra.mxu0 %v1339
    %1356 = vmatpush.xpose.msra.mxu0 %v1337
    %1357 = vmatmul.f32.gmra.mxu0 %v1333
    %v1358 = vpop.f32.mrf.mxu0
    %v1359 = vadd.f32 %v132, %v1358
    %1360 = vmatmul.f32.gmra.mxu0 %v1335
    %v1361 = vpop.f32.mrf.mxu0
    %v1362 = vadd.f32 %v133, %v1361
    %1363 = vdwg.mxu0
    %v1364 = vsel %vm217, %v1359, -inf
    %1365 = vmax.xlane.f32.xlu0 %v1364
    %v1366 = vpop.xlane.xlu0 %1365
    %v1367 = vsel %vm217, %v1362, -inf
    %1368 = vmax.xlane.f32.xlu0 %v1367
    %v1369 = vpop.xlane.xlu0 %1368
    %v1370 = vsub.f32 %v1359, %v1366
    %v1371 = vsub.f32 %v1362, %v1369
    %v1372 = vmul.f32 %v1370, 1.442695
    %v1373 = vpow.pop %v1372
    %v1374 = vmul.f32 %v1371, 1.442695
    %v1375 = vpow.pop %v1374
    %v1376 = vsel %vm217, %v1373, 0.0
    %1377 = vadd.xlane.f32.xlu0 %v1376
    %v1378 = vpop.xlane.xlu0 %1377
    %v1379 = vsel %vm217, %v1375, 0.0
    %1380 = vadd.xlane.f32.xlu0 %v1379
    %v1381 = vpop.xlane.xlu0 %1380
    %v1382 = vrcp.pop %v1378
    %v1383 = vrcp.pop %v1381
    %1384 = vrot.lane.b32.xlu0 %v936, 40
    %v1385 = vpop.permute.xlu0 %1384
    %1386 = vrot.lane.b32.xlu0 %v939, 40
    %v1387 = vpop.permute.xlu0 %1386
    %v1391 = vsel %vm217, %v1373, 0
    %v1394 = vsel %vm217, %v1375, 0
    %1396 = vmatpush.msra.mxu0 0.0
    %1397 = vmatpush.msra.mxu0 0.0
    %1398 = vmatpush.msra.mxu0 0.0
    %1399 = vmatpush.msra.mxu0 0.0
    %1400 = vmatpush.msra.mxu0 0.0
    %1401 = vmatpush.msra.mxu0 0.0
    %1402 = vmatpush.msra.mxu0 0.0
    %1403 = vmatpush.msra.mxu0 0.0
    %1404 = vmatpush.msra.mxu0 0.0
    %1405 = vmatpush.msra.mxu0 0.0
    %1406 = vmatpush.msra.mxu0 0.0
    %1407 = vmatpush.msra.mxu0 0.0
    %1408 = vmatpush.msra.mxu0 0.0
    %1409 = vmatpush.msra.mxu0 0.0
    %1410 = vmatpush.msra.mxu0 %v1387
    %1411 = vmatpush.msra.mxu0 %v1385
    %1412 = vmatmul.f32.gmra.mxu0 %v1391
    %v1413 = vpop.f32.mrf.mxu0
    %v1414 = vadd.f32 0.0, %v1413
    %1415 = vmatmul.f32.gmra.mxu0 %v1394
    %v1416 = vpop.f32.mrf.mxu0
    %v1417 = vadd.f32 0.0, %v1416
    %1418 = vdwg.mxu0
    %v1419 = vmul.f32 %v1414, %v1382
    %v1420 = vmul.f32 %v1417, %v1383
    %v1422 = vsel %vm183, %v1419, 0
    %v1425 = vsel %vm183, %v1420, 0
    %1427 = vmatpush.msra.mxu0 0.0
    %1428 = vmatpush.msra.mxu0 0.0
    %1429 = vmatpush.msra.mxu0 0.0
    %1430 = vmatpush.msra.mxu0 0.0
    %1431 = vmatpush.msra.mxu0 0.0
    %1432 = vmatpush.msra.mxu0 0.0
    %1433 = vmatpush.msra.mxu0 0.0
    %1434 = vmatpush.msra.mxu0 0.0
    %1435 = vmatpush.msra.mxu0 0.0
    %1436 = vmatpush.msra.mxu0 0.0
    %1437 = vmatpush.msra.mxu0 0.0
    %1438 = vmatpush.msra.mxu0 0.0
    %1439 = vmatpush.msra.mxu0 0.0
    %1440 = vmatpush.msra.mxu0 0.0
    %1441 = vmatpush.msra.mxu0 0.0
    %1442 = vmatpush.msra.mxu0 %v945
    %1443 = vmatmul.f32.gmra.mxu0 %v1422
    %v1444 = vpop.f32.mrf.mxu0
    %v1445 = vadd.f32 0.0, %v1444
    %1446 = vmatmul.f32.gmra.mxu0 %v1425
    %v1447 = vpop.f32.mrf.mxu0
    %v1448 = vadd.f32 0.0, %v1447
    %1449 = vdwg.mxu0
    %v1450 = vadd.f32 %v1323, %v1445
    %v1451 = vadd.f32 %v1324, %v1448
    %s1452 = scalar_lea.vmem %s7, 1
    %v1453 = vld [vmem:[%s1452] sm:$0x1]
    %v1455 = vperm.slane %v1453, 0
    %v1457 = vadd.f32 %v1450, %v1455
    %v1458 = vadd.f32 %v1451, %v1455
    %v1459 = vadd.f32 %v1457, %v900
    %v1460 = vadd.f32 %v1458, %v901
    %s1461 = scalar_lea.vmem %s8, 1
    %v1462 = vld [vmem:[%s1461] sm:$0x1]
    %s1463 = scalar_lea.vmem %s9, 1
    %v1464 = vld [vmem:[%s1463] sm:$0x1]
    %v1465 = vsel %vm70, %v1459, 0.0
    %1466 = vadd.xlane.f32.xlu0 %v1465
    %v1467 = vpop.xlane.xlu0 %1466
    %v1468 = vsel %vm70, %v1460, 0.0
    %1469 = vadd.xlane.f32.xlu0 %v1468
    %v1470 = vpop.xlane.xlu0 %1469
    %v1471 = vmul.f32 %v1467, %v83
    %v1472 = vmul.f32 %v1470, %v83
    %v1473 = vsub.f32 %v1459, %v1471
    %v1474 = vsub.f32 %v1460, %v1472
    %v1475 = vmul.f32 %v1473, %v1473
    %v1476 = vmul.f32 %v1474, %v1474
    %v1477 = vsel %vm70, %v1475, 0.0
    %1478 = vadd.xlane.f32.xlu0 %v1477
    %v1479 = vpop.xlane.xlu0 %1478
    %v1480 = vsel %vm70, %v1476, 0.0
    %1481 = vadd.xlane.f32.xlu0 %v1480
    %v1482 = vpop.xlane.xlu0 %1481
    %v1483 = vmul.f32 %v1479, %v83
    %v1484 = vmul.f32 %v1482, %v83
    %v1485 = vadd.f32 %v1483, 1e-12
    %v1486 = vadd.f32 %v1484, 1e-12
    %v1487 = vrsqrt.pop %v1485
    %v1488 = vmul.f32 %v1487, %v1485
    %v1489 = vmul.f32 %v1488, %v1487
    %v1490 = vmul.f32 0.5, %v1489
    %v1491 = vsub.f32 1.5, %v1490
    %v1492 = vmul.f32 %v1487, %v1491
    %vm1493 = vweird.f32 %v1485
    %vm1494 = vweird.f32 %v1487
    %vm1495 = vmor %vm1493, %vm1494
    %v1496 = vsel %vm1495, %v1487, %v1492
    %v1497 = vrsqrt.pop %v1486
    %v1498 = vmul.f32 %v1497, %v1486
    %v1499 = vmul.f32 %v1498, %v1497
    %v1500 = vmul.f32 0.5, %v1499
    %v1501 = vsub.f32 1.5, %v1500
    %v1502 = vmul.f32 %v1497, %v1501
    %vm1503 = vweird.f32 %v1486
    %vm1504 = vweird.f32 %v1497
    %vm1505 = vmor %vm1503, %vm1504
    %v1506 = vsel %vm1505, %v1497, %v1502
    %v1507 = vmul.f32 %v1473, %v1496
    %v1508 = vmul.f32 %v1474, %v1506
    %v1510 = vperm.slane %v1462, 0
    %v1512 = vmul.f32 %v1507, %v1510
    %v1513 = vmul.f32 %v1508, %v1510
    %v1515 = vperm.slane %v1464, 0
    %v1517 = vadd.f32 %v1512, %v1515
    %v1518 = vadd.f32 %v1513, %v1515
    %s1519 = scalar_lea.vmem %s10, 32
    %v1520 = vld [vmem:[%s1519] sm:$0xff]
    %v1521 = vld [vmem:[%s1519 + $0x8] sm:$0xff]
    %v1522 = vld [vmem:[%s1519 + $0x10] sm:$0xff]
    %v1523 = vld [vmem:[%s1519 + $0x18] sm:$0xff]
    %s1524 = scalar_lea.vmem %s11, 1
    %v1525 = vld [vmem:[%s1524] sm:$0x1]
    %v1527 = vperm.slane %v1525, 0
    %v1530 = vsel %vm70, %v1517, 0
    %v1533 = vsel %vm70, %v1518, 0
    %1535 = vmatpush.msra.mxu0 0.0
    %1536 = vmatpush.msra.mxu0 0.0
    %1537 = vmatpush.msra.mxu0 0.0
    %1538 = vmatpush.msra.mxu0 0.0
    %1539 = vmatpush.msra.mxu0 0.0
    %1540 = vmatpush.msra.mxu0 0.0
    %1541 = vmatpush.msra.mxu0 0.0
    %1542 = vmatpush.msra.mxu0 0.0
    %1543 = vmatpush.msra.mxu0 0.0
    %1544 = vmatpush.msra.mxu0 0.0
    %1545 = vmatpush.msra.mxu0 0.0
    %1546 = vmatpush.msra.mxu0 0.0
    %1547 = vmatpush.msra.mxu0 %v1523
    %1548 = vmatpush.msra.mxu0 %v1522
    %1549 = vmatpush.msra.mxu0 %v1521
    %1550 = vmatpush.msra.mxu0 %v1520
    %1551 = vmatmul.f32.gmra.mxu0 %v1530
    %v1552 = vpop.f32.mrf.mxu0
    %v1553 = vadd.f32 %v1527, %v1552
    %1554 = vmatmul.f32.gmra.mxu0 %v1533
    %v1555 = vpop.f32.mrf.mxu0
    %v1556 = vadd.f32 %v1527, %v1555
    %1557 = vdwg.mxu0
    %v1558 = vmul.f32 %v1553, 0.5
    %v1559 = vmul.f32 %v1556, 0.5
    %v1560 = vmul.f32 %v1553, 0.044715
    %v1561 = vmul.f32 %v1556, 0.044715
    %v1562 = vmul.f32 %v1560, %v1553
    %v1563 = vmul.f32 %v1561, %v1556
    %v1564 = vmul.f32 %v1562, %v1553
    %v1565 = vmul.f32 %v1563, %v1556
    %v1566 = vadd.f32 %v1553, %v1564
    %v1567 = vadd.f32 %v1556, %v1565
    %v1568 = vmul.f32 %v1566, 0.7978846
    %v1569 = vmul.f32 %v1567, 0.7978846
    %v1570 = vtanh.pop %v1568
    %v1571 = vtanh.pop %v1569
    %v1572 = vadd.f32 %v1570, 1.0
    %v1573 = vadd.f32 %v1571, 1.0
    %v1574 = vmul.f32 %v1558, %v1572
    %v1575 = vmul.f32 %v1559, %v1573
    %s1576 = scalar_lea.vmem %s12, 64
    %v1577 = vld [vmem:[%s1576] sm:$0xff]
    %v1578 = vld [vmem:[%s1576 + $0x8] sm:$0xff]
    %v1579 = vld [vmem:[%s1576 + $0x10] sm:$0xff]
    %v1580 = vld [vmem:[%s1576 + $0x18] sm:$0xff]
    %v1581 = vld [vmem:[%s1576 + $0x20] sm:$0xff]
    %v1582 = vld [vmem:[%s1576 + $0x28] sm:$0xff]
    %v1583 = vld [vmem:[%s1576 + $0x30] sm:$0xff]
    %v1584 = vld [vmem:[%s1576 + $0x38] sm:$0xff]
    %s1585 = scalar_lea.vmem %s13, 1
    %v1586 = vld [vmem:[%s1585] sm:$0x1]
    %v1588 = vperm.slane %v1586, 0
    %v1591 = vsel %vm814, %v1574, 0
    %v1594 = vsel %vm814, %v1575, 0
    %1596 = vmatpush.msra.mxu0 0.0
    %1597 = vmatpush.msra.mxu0 0.0
    %1598 = vmatpush.msra.mxu0 0.0
    %1599 = vmatpush.msra.mxu0 0.0
    %1600 = vmatpush.msra.mxu0 0.0
    %1601 = vmatpush.msra.mxu0 0.0
    %1602 = vmatpush.msra.mxu0 0.0
    %1603 = vmatpush.msra.mxu0 0.0
    %1604 = vmatpush.msra.mxu0 %v1584
    %1605 = vmatpush.msra.mxu0 %v1583
    %1606 = vmatpush.msra.mxu0 %v1582
    %1607 = vmatpush.msra.mxu0 %v1581
    %1608 = vmatpush.msra.mxu0 %v1580
    %1609 = vmatpush.msra.mxu0 %v1579
    %1610 = vmatpush.msra.mxu0 %v1578
    %1611 = vmatpush.msra.mxu0 %v1577
    %1612 = vmatmul.f32.gmra.mxu0 %v1591
    %v1613 = vpop.f32.mrf.mxu0
    %v1614 = vadd.f32 %v1588, %v1613
    %1615 = vmatmul.f32.gmra.mxu0 %v1594
    %v1616 = vpop.f32.mrf.mxu0
    %v1617 = vadd.f32 %v1588, %v1616
    %1618 = vdwg.mxu0
    %v1619 = vadd.f32 %v1614, %v1517
    %v1620 = vadd.f32 %v1617, %v1518
    %s1621 = scalar_lea.vmem %s14, 1
    %v1622 = vld [vmem:[%s1621] sm:$0x1]
    %s1623 = scalar_lea.vmem %s15, 1
    %v1624 = vld [vmem:[%s1623] sm:$0x1]
    %v1625 = vsel %vm70, %v1619, 0.0
    %1626 = vadd.xlane.f32.xlu0 %v1625
    %v1627 = vpop.xlane.xlu0 %1626
    %v1628 = vsel %vm70, %v1620, 0.0
    %1629 = vadd.xlane.f32.xlu0 %v1628
    %v1630 = vpop.xlane.xlu0 %1629
    %v1631 = vmul.f32 %v1627, %v83
    %v1632 = vmul.f32 %v1630, %v83
    %v1633 = vsub.f32 %v1619, %v1631
    %v1634 = vsub.f32 %v1620, %v1632
    %v1635 = vmul.f32 %v1633, %v1633
    %v1636 = vmul.f32 %v1634, %v1634
    %v1637 = vsel %vm70, %v1635, 0.0
    %1638 = vadd.xlane.f32.xlu0 %v1637
    %v1639 = vpop.xlane.xlu0 %1638
    %v1640 = vsel %vm70, %v1636, 0.0
    %1641 = vadd.xlane.f32.xlu0 %v1640
    %v1642 = vpop.xlane.xlu0 %1641
    %v1643 = vmul.f32 %v1639, %v83
    %v1644 = vmul.f32 %v1642, %v83
    %v1645 = vadd.f32 %v1643, 1e-12
    %v1646 = vadd.f32 %v1644, 1e-12
    %v1647 = vrsqrt.pop %v1645
    %v1648 = vmul.f32 %v1647, %v1645
    %v1649 = vmul.f32 %v1648, %v1647
    %v1650 = vmul.f32 0.5, %v1649
    %v1651 = vsub.f32 1.5, %v1650
    %v1652 = vmul.f32 %v1647, %v1651
    %vm1653 = vweird.f32 %v1645
    %vm1654 = vweird.f32 %v1647
    %vm1655 = vmor %vm1653, %vm1654
    %v1656 = vsel %vm1655, %v1647, %v1652
    %v1657 = vrsqrt.pop %v1646
    %v1658 = vmul.f32 %v1657, %v1646
    %v1659 = vmul.f32 %v1658, %v1657
    %v1660 = vmul.f32 0.5, %v1659
    %v1661 = vsub.f32 1.5, %v1660
    %v1662 = vmul.f32 %v1657, %v1661
    %vm1663 = vweird.f32 %v1646
    %vm1664 = vweird.f32 %v1657
    %vm1665 = vmor %vm1663, %vm1664
    %v1666 = vsel %vm1665, %v1657, %v1662
    %v1667 = vmul.f32 %v1633, %v1656
    %v1668 = vmul.f32 %v1634, %v1666
    %v1670 = vperm.slane %v1622, 0
    %v1672 = vmul.f32 %v1667, %v1670
    %v1673 = vmul.f32 %v1668, %v1670
    %v1675 = vperm.slane %v1624, 0
    %v1677 = vadd.f32 %v1672, %v1675
    %v1678 = vadd.f32 %v1673, %v1675
    %v1679 = vlaneseq
    %v1680 = vand.u32 %v1679, 127
    %v1681 = vlaneseq
    %v1682 = vshrl.u32 %v1681, 7
    %v1683 = vmul.u32 %v1682, 8
    %vm1684 = vcmp.eq.s32.totalorder %v1680, %v1683
    %v1685 = vsel %vm1684, 1, 0
    %v1686 = vcvt.s32.f32 %v1685
    %v1688 = vsel %vm217, %v1686, 0
    %1690 = vmatpush.msra.mxu0 0.0
    %1691 = vmatpush.msra.mxu0 0.0
    %1692 = vmatpush.msra.mxu0 0.0
    %1693 = vmatpush.msra.mxu0 0.0
    %1694 = vmatpush.msra.mxu0 0.0
    %1695 = vmatpush.msra.mxu0 0.0
    %1696 = vmatpush.msra.mxu0 0.0
    %1697 = vmatpush.msra.mxu0 0.0
    %1698 = vmatpush.msra.mxu0 0.0
    %1699 = vmatpush.msra.mxu0 0.0
    %1700 = vmatpush.msra.mxu0 0.0
    %1701 = vmatpush.msra.mxu0 0.0
    %1702 = vmatpush.msra.mxu0 0.0
    %1703 = vmatpush.msra.mxu0 0.0
    %1704 = vmatpush.msra.mxu0 %v1678
    %1705 = vmatpush.msra.mxu0 %v1677
    %1706 = vmatmul.f32.gmra.mxu0 %v1688
    %v1707 = vpop.f32.mrf.mxu0
    %v1708 = vadd.f32 0.0, %v1707
    %1709 = vdwg.mxu0
    %v1710 = vld [vmem:[%s16] sm:$0xff]
    %v1711 = vld [vmem:[%s16 + $0x8] sm:$0xff]
    %v1712 = vld [vmem:[%s16 + $0x10] sm:$0xff]
    %v1713 = vld [vmem:[%s16 + $0x18] sm:$0xff]
    %v1714 = vld [vmem:[%s17] sm:$0x1]
    %v1716 = vperm.slane %v1714, 0
    %v1719 = vsel %vm70, %v1708, 0
    %1721 = vmatpush.msra.mxu0 0.0
    %1722 = vmatpush.msra.mxu0 0.0
    %1723 = vmatpush.msra.mxu0 0.0
    %1724 = vmatpush.msra.mxu0 0.0
    %1725 = vmatpush.msra.mxu0 0.0
    %1726 = vmatpush.msra.mxu0 0.0
    %1727 = vmatpush.msra.mxu0 0.0
    %1728 = vmatpush.msra.mxu0 0.0
    %1729 = vmatpush.msra.mxu0 0.0
    %1730 = vmatpush.msra.mxu0 0.0
    %1731 = vmatpush.msra.mxu0 0.0
    %1732 = vmatpush.msra.mxu0 0.0
    %1733 = vmatpush.msra.mxu0 %v1713
    %1734 = vmatpush.msra.mxu0 %v1712
    %1735 = vmatpush.msra.mxu0 %v1711
    %1736 = vmatpush.msra.mxu0 %v1710
    %1737 = vmatmul.f32.gmra.mxu0 %v1719
    %v1738 = vpop.f32.mrf.mxu0
    %v1739 = vadd.f32 %v1716, %v1738
    %1740 = vdwg.mxu0
    %v1741 = vtanh.pop %v1739
    %v1742 = vld [vmem:[%s18] sm:$0xff]
    %v1743 = vld [vmem:[%s18 + $0x8] sm:$0xff]
    %v1744 = vld [vmem:[%s18 + $0x10] sm:$0xff]
    %v1745 = vld [vmem:[%s18 + $0x18] sm:$0xff]
    %v1746 = vld [vmem:[%s19] sm:$0x1]
    %v1748 = vperm.slane %v1746, 0
    %v1751 = vsel %vm70, %v1741, 0
    %1753 = vmatpush.msra.mxu0 0.0
    %1754 = vmatpush.msra.mxu0 0.0
    %1755 = vmatpush.msra.mxu0 0.0
    %1756 = vmatpush.msra.mxu0 0.0
    %1757 = vmatpush.msra.mxu0 0.0
    %1758 = vmatpush.msra.mxu0 0.0
    %1759 = vmatpush.msra.mxu0 0.0
    %1760 = vmatpush.msra.mxu0 0.0
    %1761 = vmatpush.msra.mxu0 0.0
    %1762 = vmatpush.msra.mxu0 0.0
    %1763 = vmatpush.msra.mxu0 0.0
    %1764 = vmatpush.msra.mxu0 0.0
    %1765 = vmatpush.msra.mxu0 %v1745
    %1766 = vmatpush.msra.mxu0 %v1744
    %1767 = vmatpush.msra.mxu0 %v1743
    %1768 = vmatpush.msra.mxu0 %v1742
    %1769 = vmatmul.f32.gmra.mxu0 %v1751
    %v1770 = vpop.f32.mrf.mxu0
    %v1771 = vadd.f32 %v1748, %v1770
    %1772 = vdwg.mxu0
    %vm1773 = vcmask 25600
    %1774 = vst.msk [vmem:[#allocation2] sm:$0x3] %vm1773, %v1771
    // Predicated region
    $region82: #{_forward_jit.1} parent=1 // pred_check
      _
    $region83: #{_forward_jit.1} parent=1 // pred_check_branch
      %1776 = sbr.rel (0) target = $region85
    $region84: #{_forward_jit.1} parent=1 // pred_region
      %1778 = vsyncadd [#allocation3], 0
      %s1780 = sshll.u32 [#allocation2], 4
      %s1781 = int_to_ptr.vmem [resolvable:$true] %s1780
      %s1782 = sshll.u32 %s20, 4
      %s1783 = int_to_ptr.hbm [resolvable:$true] %s1782
      %1785 = dma.vmem_to_hbm [thread:$0]  %s1781, 32, %s1783, [#allocation3]
    $region85: #{_forward_jit.1} parent=1 // pred_fallthru
      _
    // Predicated region
    $region86: #{_forward_jit.1} parent=1 // pred_check
      _
    $region87: #{_forward_jit.1} parent=1 // pred_check_branch
      %1787 = sbr.rel (0) target = $region89
    $region88: #{_forward_jit.1} parent=1 // pred_region
      %1789 = dma.done [#allocation3], 32
    $region89: #{_forward_jit.1} parent=1 // pred_fallthru
      _
    %1790 = vsyncpa [#allocation3], 1

</llo_original>
